<compile_context>
chip_gen: v6e
topology: v6e:2x2x1
jax: 0.10.0
libtpu: 0.0.40
codegen_flags: <defaults>
</compile_context>

<pallas_src>
import numpy as np
import jax
import jax.numpy as jnp
from jax.experimental import pallas as pl
from jax.experimental.pallas import tpu as pltpu

_GELU_C = 0.7978845608028654  # sqrt(2/pi)


def _gelu(x):
    # tanh-form GELU: tanh lowers to the EUP (separate VLIW slot), keeping the
    # contended VALU slot free in these lane-sparse (C=32) kernels.
    return 0.5 * x * (1.0 + jnp.tanh(_GELU_C * (x + 0.044715 * (x * x * x))))


# ------------------------------------------------------------ fused kernel --
def _make_kernel(apply_mlp, fuse, kk, n_tok, c_tok, eps):
    bf = jnp.bfloat16

    def kernel(*refs):
        i = 0
        dec_ref = refs[i]; i += 1
        if fuse:
            enc_ref = refs[i]; i += 1
        if apply_mlp:
            g_ref, beta_ref, w1_ref, b1_ref = refs[i:i + 4]; i += 4
        wproj_ref, fold2_ref, fbias_ref = refs[i:i + 3]; i += 3
        if fuse:
            wf1a_ref, wf1b_ref, bf1_ref, wf2_ref, bf2_ref = refs[i:i + 5]; i += 5
        out_ref = refs[i]; i += 1
        y2_ref = refs[i]                       # VMEM scratch (kk*N, C) bf16

        x = dec_ref[0]                         # (N, Cin) f32
        if apply_mlp:
            # LayerNorm(384) in f32, then Linear -> GELU (w2 is pre-fused into wproj)
            mu = jnp.mean(x, axis=-1, keepdims=True)
            xc = x - mu
            var = jnp.mean(xc * xc, axis=-1, keepdims=True)
            xn = xc * jax.lax.rsqrt(var + eps) * g_ref[...] + beta_ref[...]
            h = jnp.dot(xn.astype(bf), w1_ref[...],
                        preferred_element_type=jnp.float32) + b1_ref[...]
            h = _gelu(h)
        else:
            h = x

        # project: ONE (N, C) x (C, kk*C) matmul.  The projection bias (and
        # w2/b2 when apply_mlp) was folded into wproj / fbias host-side.
        y = jnp.dot(h.astype(bf), wproj_ref[...],
                    preferred_element_type=jnp.float32)          # (N, kk*C)
        yb = y.astype(bf)
        # Manual relayout (N, kk*C) -> (kk*N, C), row = p*N + l: kk static
        # lane-slices + aligned sublane stores (avoids a general reshape).
        for p in range(kk):
            y2_ref[pl.ds(p * n_tok, n_tok), :] = yb[:, p * c_tok:(p + 1) * c_tok]

        # fold (nn.Fold / col2im) == ONE 0/1 matmul + precomputed per-pixel bias.
        folded = jnp.dot(fold2_ref[...], y2_ref[...],
                         preferred_element_type=jnp.float32) + fbias_ref[...]

        if fuse:
            # concat([folded, enc]) @ Wf1 == folded @ Wf1[:C] + enc @ Wf1[C:]
            hf = (jnp.dot(folded.astype(bf), wf1a_ref[...],
                          preferred_element_type=jnp.float32)
                  + jnp.dot(enc_ref[0].astype(bf), wf1b_ref[...],
                            preferred_element_type=jnp.float32)
                  + bf1_ref[...])
            hf = _gelu(hf)
            out_ref[0] = (jnp.dot(hf.astype(bf), wf2_ref[...],
                                  preferred_element_type=jnp.float32)
                          + bf2_ref[...])
        else:
            out_ref[0] = folded

    return kernel


# -------------------------------------------------- one-time host packing --
def build_fold_matrices(H, W, k, stride, pad, n_h, n_w):
    """A[p, h*W+w, l] = 1 iff patch l at kernel offset p = ki*k+kj lands on (h, w)."""
    L, kk = n_h * n_w, k * k
    A = np.zeros((kk, H * W, L), dtype=np.float32)
    for l in range(L):
        li, lj = divmod(l, n_w)
        for ki in range(k):
            for kj in range(k):
                h = li * stride - pad + ki
                w = lj * stride - pad + kj
                if 0 <= h < H and 0 <= w < W:
                    A[ki * k + kj, h * W + w, l] = 1.0
    return A


def prepare_decoder(params, cfg):
    """One-time weight packing (hoisted out of the per-forward path)."""
    C, kk = cfg["token_dim"], cfg["kk"]
    H = W = cfg["img_size"] // cfg["ratio"]
    k, stride, pad = cfg.get("kernel", 3), cfg.get("stride", 2), cfg.get("pad", 1)
    n = (H + 2 * pad - k) // stride + 1
    N = n * n
    fuse = cfg["fuse"]
    apply_mlp = cfg.get("apply_mlp", True)   # module: runs norm+mlp iff Cin == 384
    bf = jnp.bfloat16

    fold = build_fold_matrices(H, W, k, stride, pad, n, n)        # (kk, HW, N)

    # Torch projection column order is c*kk + p (nn.Fold channel = c*kk + offset).
    wp = np.asarray(params["wp"], np.float32)                     # (C, C*kk)
    bp = np.asarray(params["bp"], np.float32).reshape(-1)         # (C*kk,)
    if apply_mlp:
        # Fuse mlp's second Linear into the projection (no nonlinearity between):
        #   (h @ w2 + b2) @ wp + bp == h @ (w2 @ wp) + (b2 @ wp + bp)   [all f32]
        w2 = np.asarray(params["w2"], np.float32)
        b2 = np.asarray(params["b2"], np.float32).reshape(-1)
        bp = b2 @ wp + bp
        wp = w2 @ wp
    # Repack projection columns p-major: col p*C + c  <-  c*kk + p.
    wproj = wp.reshape(C, C, kk).transpose(0, 2, 1).reshape(C, kk * C)
    # Fold is linear, so fold(projection bias) is a constant (HW, C) tensor.
    bp_per_off = bp.reshape(C, kk).T                              # (kk, C)
    fold_bias = np.einsum('phl,pc->hc', fold, bp_per_off)         # (HW, C) f32
    # FOLD2[hw, p*N + l] = fold[p, hw, l]  (matches the kernel's y2 row order).
    fold2 = fold.transpose(1, 0, 2).reshape(H * W, kk * N)

    packed = dict(
        wproj=jnp.asarray(wproj, bf),
        fold2=jnp.asarray(fold2, bf),            # 0/1 values -> exact in bf16
        fold_bias=jnp.asarray(fold_bias, jnp.float32),
    )
    if apply_mlp:
        packed.update(
            gamma=jnp.asarray(params["gamma"], jnp.float32),
            beta=jnp.asarray(params["beta"], jnp.float32),
            w1=jnp.asarray(params["w1"], bf),
            b1=jnp.asarray(params["b1"], jnp.float32),
        )
    if fuse:
        wf1 = np.asarray(params["wf1"], np.float32)
        packed.update(
            wf1a=jnp.asarray(wf1[:C], bf),       # rows matching the decoded half
            wf1b=jnp.asarray(wf1[C:], bf),       # rows matching enc_fea
            bf1=jnp.asarray(params["bf1"], jnp.float32),
            wf2=jnp.asarray(params["wf2"], bf),
            bf2=jnp.asarray(params["bf2"], jnp.float32),
        )
    meta = dict(N=N, HW=H * W, C=C, kk=kk, apply_mlp=apply_mlp, fuse=fuse)
    return packed, meta


# ------------------------------------------------------------------- glue --
def decoder_forward(dec_fea, enc_fea, packed, meta):
    B, N, Cin = dec_fea.shape
    C, HW, kk = meta["C"], meta["HW"], meta["kk"]
    fuse, apply_mlp = meta["fuse"], meta["apply_mlp"]
    assert N == meta["N"]
    # Module semantics: the norm+mlp branch runs iff the input has 384 channels.
    assert (Cin == 384) == apply_mlp, "packed weights do not match input width"

    def rep(a):  # replicated (weight) spec: whole array, same block every step
        return pl.BlockSpec(a.shape, lambda b, _nd=a.ndim: (0,) * _nd)

    args = [dec_fea]
    specs = [pl.BlockSpec((1, N, Cin), lambda b: (b, 0, 0))]
    if fuse:
        args.append(enc_fea)
        specs.append(pl.BlockSpec((1, HW, C), lambda b: (b, 0, 0)))
    reps = []
    if apply_mlp:
        reps += [packed["gamma"], packed["beta"], packed["w1"], packed["b1"]]
    reps += [packed["wproj"], packed["fold2"], packed["fold_bias"]]
    if fuse:
        reps += [packed["wf1a"], packed["wf1b"], packed["bf1"],
                 packed["wf2"], packed["bf2"]]
    args += reps
    specs += [rep(a) for a in reps]

    kernel = _make_kernel(apply_mlp, fuse, kk, N, C, eps=1e-5)

    return pl.pallas_call(
        kernel,
        out_shape=jax.ShapeDtypeStruct((B, HW, C), jnp.float32),
        grid_spec=pltpu.PrefetchScalarGridSpec(
            num_scalar_prefetch=0,
            grid=(B,),
            in_specs=specs,
            out_specs=pl.BlockSpec((1, HW, C), lambda b: (b, 0, 0)),
            scratch_shapes=[pltpu.VMEM((kk * N, C), jnp.bfloat16)],
        ),
        compiler_params=pltpu.CompilerParams(
            dimension_semantics=("parallel",),
            vmem_limit_bytes=32 * 1024 * 1024,
        ),
    )(*args)


# ------------------------------------------------------- pure-JAX reference --
def reference_forward(dec_fea, enc_fea, params, cfg):
    # f32 throughout, exact-erf GELU, explicit nn.Fold scatter-add — torch semantics.
    C, kk = cfg["token_dim"], cfg["kk"]
    H = W = cfg["img_size"] // cfg["ratio"]
    k, stride, pad = cfg.get("kernel", 3), cfg.get("stride", 2), cfg.get("pad", 1)
    x = dec_fea
    if x.shape[-1] == 384:
        mu = jnp.mean(x, -1, keepdims=True)
        var = jnp.mean((x - mu) ** 2, -1, keepdims=True)
        xn = (x - mu) / jnp.sqrt(var + 1e-5) * params["gamma"][0] + params["beta"][0]
        h = jax.nn.gelu(xn @ params["w1"] + params["b1"][0], approximate=False)
        x = h @ params["w2"] + params["b2"][0]
    y = x @ params["wp"] + params["bp"][0]          # (B, L, C*kk), col order c*kk+p
    B, L, _ = y.shape
    n_w = (W + 2 * pad - k) // stride + 1
    out = jnp.zeros((B, C, H, W), jnp.float32)
    ycols = y.reshape(B, L, C, kk)
    for l in range(L):
        li, lj = divmod(l, n_w)
        for ki in range(k):
            for kj in range(k):
                hh, ww = li * stride - pad + ki, lj * stride - pad + kj
                if 0 <= hh < H and 0 <= ww < W:
                    out = out.at[:, :, hh, ww].add(ycols[:, l, :, ki * k + kj])
    dec2 = out.reshape(B, C, H * W).transpose(0, 2, 1)
    if cfg["fuse"]:
        cat = jnp.concatenate([dec2, enc_fea], axis=-1)
        hf = jax.nn.gelu(cat @ params["wf1"] + params["bf1"][0], approximate=False)
        dec2 = hf @ params["wf2"] + params["bf2"][0]
    return dec2


if __name__ == "__main__":
    # Small shapes consistent with the module: dim=384 (exercises the C==384
    # norm+mlp branch), token_dim=32, img_size=16, ratio=2 -> Fold output 8x8,
    # kernel 3x3 / stride 2 / pad 1 -> 4x4 = 16 input tokens, 64 output tokens.
    cfg = dict(dim=384, token_dim=32, img_size=16, ratio=2, kk=9,
               fuse=True, apply_mlp=True, kernel=3, stride=2, pad=1)
    H = W = cfg["img_size"] // cfg["ratio"]
    k, stride, pad = cfg["kernel"], cfg["stride"], cfg["pad"]
    n = (H + 2 * pad - k) // stride + 1
    N = n * n
    B, C, dim, kk = 2, cfg["token_dim"], cfg["dim"], cfg["kk"]

    key = jax.random.PRNGKey(0)
    ks = jax.random.split(key, 14)
    s = 0.05
    params = dict(
        gamma=1.0 + 0.1 * jax.random.normal(ks[0], (1, dim), jnp.float32),
        beta=0.1 * jax.random.normal(ks[1], (1, dim), jnp.float32),
        w1=s * jax.random.normal(ks[2], (dim, C), jnp.float32),
        b1=s * jax.random.normal(ks[3], (1, C), jnp.float32),
        w2=s * jax.random.normal(ks[4], (C, C), jnp.float32),
        b2=s * jax.random.normal(ks[5], (1, C), jnp.float32),
        wp=s * jax.random.normal(ks[6], (C, C * kk), jnp.float32),
        bp=s * jax.random.normal(ks[7], (1, C * kk), jnp.float32),
        wf1=s * jax.random.normal(ks[8], (2 * C, C), jnp.float32),
        bf1=s * jax.random.normal(ks[9], (1, C), jnp.float32),
        wf2=s * jax.random.normal(ks[10], (C, C), jnp.float32),
        bf2=s * jax.random.normal(ks[11], (1, C), jnp.float32),
    )
    dec_fea = jax.random.normal(ks[12], (B, N, dim), jnp.float32)
    enc_fea = jax.random.normal(ks[13], (B, H * W, C), jnp.float32)

    packed, meta = prepare_decoder(params, cfg)      # one-time host-side packing
    out = decoder_forward(dec_fea, enc_fea, packed, meta)
    out = jax.block_until_ready(out)
    assert out.shape == (B, H * W, C)

    # Kernel uses bf16 MXU operands + tanh-GELU; reference is f32 exact-erf,
    # so compare at bf16-appropriate tolerance (expected |err| ~1e-3 on O(0.1)
    # values; structural bugs would show as O(0.1) mismatches).
    ref = reference_forward(dec_fea, enc_fea, params, cfg)
    np.testing.assert_allclose(np.asarray(out), np.asarray(ref),
                               rtol=2e-2, atol=1.5e-2)
    print("KERNEL_OK")
</pallas_src>

<mosaic_0001>
module attributes {stable_mosaic.version = 11 : i64} {
  func.func @kernel(%arg0: i32, %arg1: memref<1x16x384xf32, #tpu.memory_space<vmem>>, %arg2: memref<1x64x32xf32, #tpu.memory_space<vmem>>, %arg3: memref<1x384xf32, #tpu.memory_space<vmem>>, %arg4: memref<1x384xf32, #tpu.memory_space<vmem>>, %arg5: memref<384x32xbf16, #tpu.memory_space<vmem>>, %arg6: memref<1x32xf32, #tpu.memory_space<vmem>>, %arg7: memref<32x288xbf16, #tpu.memory_space<vmem>>, %arg8: memref<64x144xbf16, #tpu.memory_space<vmem>>, %arg9: memref<64x32xf32, #tpu.memory_space<vmem>>, %arg10: memref<32x32xbf16, #tpu.memory_space<vmem>>, %arg11: memref<32x32xbf16, #tpu.memory_space<vmem>>, %arg12: memref<1x32xf32, #tpu.memory_space<vmem>>, %arg13: memref<32x32xbf16, #tpu.memory_space<vmem>>, %arg14: memref<1x32xf32, #tpu.memory_space<vmem>>, %arg15: memref<1x64x32xf32, #tpu.memory_space<vmem>>, %arg16: memref<144x32xbf16, #tpu.memory_space<vmem>>) attributes {dimension_semantics = [#tpu.dimension_semantics<parallel>], iteration_bounds = array<i64: 2>, scalar_prefetch = 0 : i64, scratch_operands = 1 : i64, tpu.core_type = #tpu.core_type<tc>, window_params = [{transform_indices = @transform_0, window_bounds = array<i64: 1, 16, 384>}, {transform_indices = @transform_1, window_bounds = array<i64: 1, 64, 32>}, {pipeline_mode = #tpu.pipeline_mode<synchronous>, transform_indices = @transform_2, window_bounds = array<i64: 1, 384>}, {pipeline_mode = #tpu.pipeline_mode<synchronous>, transform_indices = @transform_3, window_bounds = array<i64: 1, 384>}, {pipeline_mode = #tpu.pipeline_mode<synchronous>, transform_indices = @transform_4, window_bounds = array<i64: 384, 32>}, {pipeline_mode = #tpu.pipeline_mode<synchronous>, transform_indices = @transform_5, window_bounds = array<i64: 1, 32>}, {pipeline_mode = #tpu.pipeline_mode<synchronous>, transform_indices = @transform_6, window_bounds = array<i64: 32, 288>}, {pipeline_mode = #tpu.pipeline_mode<synchronous>, transform_indices = @transform_7, window_bounds = array<i64: 64, 144>}, {pipeline_mode = #tpu.pipeline_mode<synchronous>, transform_indices = @transform_8, window_bounds = array<i64: 64, 32>}, {pipeline_mode = #tpu.pipeline_mode<synchronous>, transform_indices = @transform_9, window_bounds = array<i64: 32, 32>}, {pipeline_mode = #tpu.pipeline_mode<synchronous>, transform_indices = @transform_10, window_bounds = array<i64: 32, 32>}, {pipeline_mode = #tpu.pipeline_mode<synchronous>, transform_indices = @transform_11, window_bounds = array<i64: 1, 32>}, {pipeline_mode = #tpu.pipeline_mode<synchronous>, transform_indices = @transform_12, window_bounds = array<i64: 32, 32>}, {pipeline_mode = #tpu.pipeline_mode<synchronous>, transform_indices = @transform_13, window_bounds = array<i64: 1, 32>}, {transform_indices = @transform_14, window_bounds = array<i64: 1, 64, 32>}]} {
    %c0 = arith.constant 0 : index
    %c0_0 = arith.constant 0 : index
    %c0_1 = arith.constant 0 : index
    %0 = vector.load %arg1[%c0, %c0_0, %c0_1] : memref<1x16x384xf32, #tpu.memory_space<vmem>>, vector<1x16x384xf32>
    %1 = vector.shape_cast %0 : vector<1x16x384xf32> to vector<16x384xf32>
    %cst = arith.constant dense<0.000000e+00> : vector<16xf32>
    %2 = vector.multi_reduction <add>, %1, %cst [1] : vector<16x384xf32> to vector<16xf32>
    %3 = vector.shape_cast %2 : vector<16xf32> to vector<16x1xf32>
    %cst_2 = arith.constant 3.840000e+02 : f32
    %4 = vector.broadcast %cst_2 : f32 to vector<16x1xf32>
    %5 = arith.divf %3, %4 : vector<16x1xf32>
    %6 = vector.broadcast %5 : vector<16x1xf32> to vector<16x384xf32>
    %7 = arith.subf %1, %6 : vector<16x384xf32>
    %8 = arith.mulf %7, %7 : vector<16x384xf32>
    %cst_3 = arith.constant dense<0.000000e+00> : vector<16xf32>
    %9 = vector.multi_reduction <add>, %8, %cst_3 [1] : vector<16x384xf32> to vector<16xf32>
    %10 = vector.shape_cast %9 : vector<16xf32> to vector<16x1xf32>
    %cst_4 = arith.constant 3.840000e+02 : f32
    %11 = vector.broadcast %cst_4 : f32 to vector<16x1xf32>
    %12 = arith.divf %10, %11 : vector<16x1xf32>
    %cst_5 = arith.constant 9.99999974E-6 : f32
    %13 = vector.broadcast %cst_5 : f32 to vector<16x1xf32>
    %14 = arith.addf %12, %13 : vector<16x1xf32>
    %15 = math.rsqrt %14 : vector<16x1xf32>
    %16 = vector.broadcast %15 : vector<16x1xf32> to vector<16x384xf32>
    %17 = arith.mulf %7, %16 : vector<16x384xf32>
    %c0_6 = arith.constant 0 : index
    %c0_7 = arith.constant 0 : index
    %18 = vector.load %arg3[%c0_6, %c0_7] : memref<1x384xf32, #tpu.memory_space<vmem>>, vector<1x384xf32>
    %19 = vector.broadcast %18 : vector<1x384xf32> to vector<16x384xf32>
    %20 = arith.mulf %17, %19 : vector<16x384xf32>
    %c0_8 = arith.constant 0 : index
    %c0_9 = arith.constant 0 : index
    %21 = vector.load %arg4[%c0_8, %c0_9] : memref<1x384xf32, #tpu.memory_space<vmem>>, vector<1x384xf32>
    %22 = vector.broadcast %21 : vector<1x384xf32> to vector<16x384xf32>
    %23 = arith.addf %20, %22 : vector<16x384xf32>
    %24 = arith.truncf %23 : vector<16x384xf32> to vector<16x384xbf16>
    %c0_10 = arith.constant 0 : index
    %c0_11 = arith.constant 0 : index
    %25 = vector.load %arg5[%c0_10, %c0_11] : memref<384x32xbf16, #tpu.memory_space<vmem>>, vector<384x32xbf16>
    %cst_12 = arith.constant dense<0.000000e+00> : vector<16x32xf32>
    %26 = tpu.matmul %24, %25, %cst_12 {dimension_numbers = #tpu.dot_dimension_numbers<[1], [0], [0], [1], [0, 0, 1, 1], [], []>} : vector<16x384xbf16>, vector<384x32xbf16>, vector<16x32xf32> -> vector<16x32xf32>
    %c0_13 = arith.constant 0 : index
    %c0_14 = arith.constant 0 : index
    %27 = vector.load %arg6[%c0_13, %c0_14] : memref<1x32xf32, #tpu.memory_space<vmem>>, vector<1x32xf32>
    %28 = vector.broadcast %27 : vector<1x32xf32> to vector<16x32xf32>
    %29 = arith.addf %26, %28 : vector<16x32xf32>
    %cst_15 = arith.constant 5.000000e-01 : f32
    %30 = vector.broadcast %cst_15 : f32 to vector<16x32xf32>
    %31 = arith.mulf %30, %29 : vector<16x32xf32>
    %32 = arith.mulf %29, %29 : vector<16x32xf32>
    %33 = arith.mulf %32, %29 : vector<16x32xf32>
    %cst_16 = arith.constant 4.471500e-02 : f32
    %34 = vector.broadcast %cst_16 : f32 to vector<16x32xf32>
    %35 = arith.mulf %34, %33 : vector<16x32xf32>
    %36 = arith.addf %29, %35 : vector<16x32xf32>
    %cst_17 = arith.constant 0.797884583 : f32
    %37 = vector.broadcast %cst_17 : f32 to vector<16x32xf32>
    %38 = arith.mulf %37, %36 : vector<16x32xf32>
    %39 = math.tanh %38 : vector<16x32xf32>
    %cst_18 = arith.constant 1.000000e+00 : f32
    %40 = vector.broadcast %cst_18 : f32 to vector<16x32xf32>
    %41 = arith.addf %40, %39 : vector<16x32xf32>
    %42 = arith.mulf %31, %41 : vector<16x32xf32>
    %43 = arith.truncf %42 : vector<16x32xf32> to vector<16x32xbf16>
    %c0_19 = arith.constant 0 : index
    %c0_20 = arith.constant 0 : index
    %44 = vector.load %arg7[%c0_19, %c0_20] : memref<32x288xbf16, #tpu.memory_space<vmem>>, vector<32x288xbf16>
    %cst_21 = arith.constant dense<0.000000e+00> : vector<16x288xf32>
    %45 = tpu.matmul %43, %44, %cst_21 {dimension_numbers = #tpu.dot_dimension_numbers<[1], [0], [0], [1], [0, 0, 1, 1], [], []>} : vector<16x32xbf16>, vector<32x288xbf16>, vector<16x288xf32> -> vector<16x288xf32>
    %46 = arith.truncf %45 : vector<16x288xf32> to vector<16x288xbf16>
    %47 = vector.extract_strided_slice %46 {offsets = [0, 0], sizes = [16, 32], strides = [1, 1]} : vector<16x288xbf16> to vector<16x32xbf16>
    %c0_22 = arith.constant 0 : index
    %c0_23 = arith.constant 0 : index
    %48 = vector.load %arg16[%c0_22, %c0_23] : memref<144x32xbf16, #tpu.memory_space<vmem>>, vector<16x32xbf16>
    tpu.vector_store %arg16[%c0_22, %c0_23], %47 {strides = array<i32>} : memref<144x32xbf16, #tpu.memory_space<vmem>>, vector<16x32xbf16>,
    %49 = vector.extract_strided_slice %46 {offsets = [0, 32], sizes = [16, 32], strides = [1, 1]} : vector<16x288xbf16> to vector<16x32xbf16>
    %c16 = arith.constant 16 : index
    %c0_24 = arith.constant 0 : index
    %50 = vector.load %arg16[%c16, %c0_24] : memref<144x32xbf16, #tpu.memory_space<vmem>>, vector<16x32xbf16>
    tpu.vector_store %arg16[%c16, %c0_24], %49 {strides = array<i32>} : memref<144x32xbf16, #tpu.memory_space<vmem>>, vector<16x32xbf16>,
    %51 = vector.extract_strided_slice %46 {offsets = [0, 64], sizes = [16, 32], strides = [1, 1]} : vector<16x288xbf16> to vector<16x32xbf16>
    %c32 = arith.constant 32 : index
    %c0_25 = arith.constant 0 : index
    %52 = vector.load %arg16[%c32, %c0_25] : memref<144x32xbf16, #tpu.memory_space<vmem>>, vector<16x32xbf16>
    tpu.vector_store %arg16[%c32, %c0_25], %51 {strides = array<i32>} : memref<144x32xbf16, #tpu.memory_space<vmem>>, vector<16x32xbf16>,
    %53 = vector.extract_strided_slice %46 {offsets = [0, 96], sizes = [16, 32], strides = [1, 1]} : vector<16x288xbf16> to vector<16x32xbf16>
    %c48 = arith.constant 48 : index
    %c0_26 = arith.constant 0 : index
    %54 = vector.load %arg16[%c48, %c0_26] : memref<144x32xbf16, #tpu.memory_space<vmem>>, vector<16x32xbf16>
    tpu.vector_store %arg16[%c48, %c0_26], %53 {strides = array<i32>} : memref<144x32xbf16, #tpu.memory_space<vmem>>, vector<16x32xbf16>,
    %55 = vector.extract_strided_slice %46 {offsets = [0, 128], sizes = [16, 32], strides = [1, 1]} : vector<16x288xbf16> to vector<16x32xbf16>
    %c64 = arith.constant 64 : index
    %c0_27 = arith.constant 0 : index
    %56 = vector.load %arg16[%c64, %c0_27] : memref<144x32xbf16, #tpu.memory_space<vmem>>, vector<16x32xbf16>
    tpu.vector_store %arg16[%c64, %c0_27], %55 {strides = array<i32>} : memref<144x32xbf16, #tpu.memory_space<vmem>>, vector<16x32xbf16>,
    %57 = vector.extract_strided_slice %46 {offsets = [0, 160], sizes = [16, 32], strides = [1, 1]} : vector<16x288xbf16> to vector<16x32xbf16>
    %c80 = arith.constant 80 : index
    %c0_28 = arith.constant 0 : index
    %58 = vector.load %arg16[%c80, %c0_28] : memref<144x32xbf16, #tpu.memory_space<vmem>>, vector<16x32xbf16>
    tpu.vector_store %arg16[%c80, %c0_28], %57 {strides = array<i32>} : memref<144x32xbf16, #tpu.memory_space<vmem>>, vector<16x32xbf16>,
    %59 = vector.extract_strided_slice %46 {offsets = [0, 192], sizes = [16, 32], strides = [1, 1]} : vector<16x288xbf16> to vector<16x32xbf16>
    %c96 = arith.constant 96 : index
    %c0_29 = arith.constant 0 : index
    %60 = vector.load %arg16[%c96, %c0_29] : memref<144x32xbf16, #tpu.memory_space<vmem>>, vector<16x32xbf16>
    tpu.vector_store %arg16[%c96, %c0_29], %59 {strides = array<i32>} : memref<144x32xbf16, #tpu.memory_space<vmem>>, vector<16x32xbf16>,
    %61 = vector.extract_strided_slice %46 {offsets = [0, 224], sizes = [16, 32], strides = [1, 1]} : vector<16x288xbf16> to vector<16x32xbf16>
    %c112 = arith.constant 112 : index
    %c0_30 = arith.constant 0 : index
    %62 = vector.load %arg16[%c112, %c0_30] : memref<144x32xbf16, #tpu.memory_space<vmem>>, vector<16x32xbf16>
    tpu.vector_store %arg16[%c112, %c0_30], %61 {strides = array<i32>} : memref<144x32xbf16, #tpu.memory_space<vmem>>, vector<16x32xbf16>,
    %63 = vector.extract_strided_slice %46 {offsets = [0, 256], sizes = [16, 32], strides = [1, 1]} : vector<16x288xbf16> to vector<16x32xbf16>
    %c128 = arith.constant 128 : index
    %c0_31 = arith.constant 0 : index
    %64 = vector.load %arg16[%c128, %c0_31] : memref<144x32xbf16, #tpu.memory_space<vmem>>, vector<16x32xbf16>
    tpu.vector_store %arg16[%c128, %c0_31], %63 {strides = array<i32>} : memref<144x32xbf16, #tpu.memory_space<vmem>>, vector<16x32xbf16>,
    %c0_32 = arith.constant 0 : index
    %c0_33 = arith.constant 0 : index
    %65 = vector.load %arg8[%c0_32, %c0_33] : memref<64x144xbf16, #tpu.memory_space<vmem>>, vector<64x144xbf16>
    %c0_34 = arith.constant 0 : index
    %c0_35 = arith.constant 0 : index
    %66 = vector.load %arg16[%c0_34, %c0_35] : memref<144x32xbf16, #tpu.memory_space<vmem>>, vector<144x32xbf16>
    %cst_36 = arith.constant dense<0.000000e+00> : vector<64x32xf32>
    %67 = tpu.matmul %65, %66, %cst_36 {dimension_numbers = #tpu.dot_dimension_numbers<[1], [0], [0], [1], [0, 0, 1, 1], [], []>} : vector<64x144xbf16>, vector<144x32xbf16>, vector<64x32xf32> -> vector<64x32xf32>
    %c0_37 = arith.constant 0 : index
    %c0_38 = arith.constant 0 : index
    %68 = vector.load %arg9[%c0_37, %c0_38] : memref<64x32xf32, #tpu.memory_space<vmem>>, vector<64x32xf32>
    %69 = arith.addf %67, %68 : vector<64x32xf32>
    %70 = arith.truncf %69 : vector<64x32xf32> to vector<64x32xbf16>
    %c0_39 = arith.constant 0 : index
    %c0_40 = arith.constant 0 : index
    %71 = vector.load %arg10[%c0_39, %c0_40] : memref<32x32xbf16, #tpu.memory_space<vmem>>, vector<32x32xbf16>
    %cst_41 = arith.constant dense<0.000000e+00> : vector<64x32xf32>
    %72 = tpu.matmul %70, %71, %cst_41 {dimension_numbers = #tpu.dot_dimension_numbers<[1], [0], [0], [1], [0, 0, 1, 1], [], []>} : vector<64x32xbf16>, vector<32x32xbf16>, vector<64x32xf32> -> vector<64x32xf32>
    %c0_42 = arith.constant 0 : index
    %c0_43 = arith.constant 0 : index
    %c0_44 = arith.constant 0 : index
    %73 = vector.load %arg2[%c0_42, %c0_43, %c0_44] : memref<1x64x32xf32, #tpu.memory_space<vmem>>, vector<1x64x32xf32>
    %74 = vector.shape_cast %73 : vector<1x64x32xf32> to vector<64x32xf32>
    %75 = arith.truncf %74 : vector<64x32xf32> to vector<64x32xbf16>
    %c0_45 = arith.constant 0 : index
    %c0_46 = arith.constant 0 : index
    %76 = vector.load %arg11[%c0_45, %c0_46] : memref<32x32xbf16, #tpu.memory_space<vmem>>, vector<32x32xbf16>
    %cst_47 = arith.constant dense<0.000000e+00> : vector<64x32xf32>
    %77 = tpu.matmul %75, %76, %cst_47 {dimension_numbers = #tpu.dot_dimension_numbers<[1], [0], [0], [1], [0, 0, 1, 1], [], []>} : vector<64x32xbf16>, vector<32x32xbf16>, vector<64x32xf32> -> vector<64x32xf32>
    %78 = arith.addf %72, %77 : vector<64x32xf32>
    %c0_48 = arith.constant 0 : index
    %c0_49 = arith.constant 0 : index
    %79 = vector.load %arg12[%c0_48, %c0_49] : memref<1x32xf32, #tpu.memory_space<vmem>>, vector<1x32xf32>
    %80 = vector.broadcast %79 : vector<1x32xf32> to vector<64x32xf32>
    %81 = arith.addf %78, %80 : vector<64x32xf32>
    %cst_50 = arith.constant 5.000000e-01 : f32
    %82 = vector.broadcast %cst_50 : f32 to vector<64x32xf32>
    %83 = arith.mulf %82, %81 : vector<64x32xf32>
    %84 = arith.mulf %81, %81 : vector<64x32xf32>
    %85 = arith.mulf %84, %81 : vector<64x32xf32>
    %cst_51 = arith.constant 4.471500e-02 : f32
    %86 = vector.broadcast %cst_51 : f32 to vector<64x32xf32>
    %87 = arith.mulf %86, %85 : vector<64x32xf32>
    %88 = arith.addf %81, %87 : vector<64x32xf32>
    %cst_52 = arith.constant 0.797884583 : f32
    %89 = vector.broadcast %cst_52 : f32 to vector<64x32xf32>
    %90 = arith.mulf %89, %88 : vector<64x32xf32>
    %91 = math.tanh %90 : vector<64x32xf32>
    %cst_53 = arith.constant 1.000000e+00 : f32
    %92 = vector.broadcast %cst_53 : f32 to vector<64x32xf32>
    %93 = arith.addf %92, %91 : vector<64x32xf32>
    %94 = arith.mulf %83, %93 : vector<64x32xf32>
    %95 = arith.truncf %94 : vector<64x32xf32> to vector<64x32xbf16>
    %c0_54 = arith.constant 0 : index
    %c0_55 = arith.constant 0 : index
    %96 = vector.load %arg13[%c0_54, %c0_55] : memref<32x32xbf16, #tpu.memory_space<vmem>>, vector<32x32xbf16>
    %cst_56 = arith.constant dense<0.000000e+00> : vector<64x32xf32>
    %97 = tpu.matmul %95, %96, %cst_56 {dimension_numbers = #tpu.dot_dimension_numbers<[1], [0], [0], [1], [0, 0, 1, 1], [], []>} : vector<64x32xbf16>, vector<32x32xbf16>, vector<64x32xf32> -> vector<64x32xf32>
    %c0_57 = arith.constant 0 : index
    %c0_58 = arith.constant 0 : index
    %98 = vector.load %arg14[%c0_57, %c0_58] : memref<1x32xf32, #tpu.memory_space<vmem>>, vector<1x32xf32>
    %99 = vector.broadcast %98 : vector<1x32xf32> to vector<64x32xf32>
    %100 = arith.addf %97, %99 : vector<64x32xf32>
    %c0_59 = arith.constant 0 : index
    %c0_60 = arith.constant 0 : index
    %c0_61 = arith.constant 0 : index
    %101 = vector.load %arg15[%c0_59, %c0_60, %c0_61] : memref<1x64x32xf32, #tpu.memory_space<vmem>>, vector<1x64x32xf32>
    %102 = vector.shape_cast %101 : vector<1x64x32xf32> to vector<64x32xf32>
    %103 = vector.shape_cast %100 : vector<64x32xf32> to vector<1x64x32xf32>
    tpu.vector_store %arg15[%c0_59, %c0_60, %c0_61], %103 {strides = array<i32>} : memref<1x64x32xf32, #tpu.memory_space<vmem>>, vector<1x64x32xf32>,
    return
  }
  func.func @transform_0(%arg0: i32) -> (i32, i32, i32) {
    %c0_i32 = arith.constant 0 : i32
    %c0_i32_0 = arith.constant 0 : i32
    %c0_i32_1 = arith.constant 0 : i32
    return %arg0, %c0_i32, %c0_i32_0 : i32, i32, i32
  }
  func.func @transform_1(%arg0: i32) -> (i32, i32, i32) {
    %c0_i32 = arith.constant 0 : i32
    %c0_i32_0 = arith.constant 0 : i32
    %c0_i32_1 = arith.constant 0 : i32
    return %arg0, %c0_i32, %c0_i32_0 : i32, i32, i32
  }
  func.func @transform_2(%arg0: i32) -> (i32, i32) {
    %c0_i32 = arith.constant 0 : i32
    %c0_i32_0 = arith.constant 0 : i32
    %c0_i32_1 = arith.constant 0 : i32
    return %c0_i32, %c0_i32_0 : i32, i32
  }
  func.func @transform_3(%arg0: i32) -> (i32, i32) {
    %c0_i32 = arith.constant 0 : i32
    %c0_i32_0 = arith.constant 0 : i32
    %c0_i32_1 = arith.constant 0 : i32
    return %c0_i32, %c0_i32_0 : i32, i32
  }
  func.func @transform_4(%arg0: i32) -> (i32, i32) {
    %c0_i32 = arith.constant 0 : i32
    %c0_i32_0 = arith.constant 0 : i32
    %c0_i32_1 = arith.constant 0 : i32
    return %c0_i32, %c0_i32_0 : i32, i32
  }
  func.func @transform_5(%arg0: i32) -> (i32, i32) {
    %c0_i32 = arith.constant 0 : i32
    %c0_i32_0 = arith.constant 0 : i32
    %c0_i32_1 = arith.constant 0 : i32
    return %c0_i32, %c0_i32_0 : i32, i32
  }
  func.func @transform_6(%arg0: i32) -> (i32, i32) {
    %c0_i32 = arith.constant 0 : i32
    %c0_i32_0 = arith.constant 0 : i32
    %c0_i32_1 = arith.constant 0 : i32
    return %c0_i32, %c0_i32_0 : i32, i32
  }
  func.func @transform_7(%arg0: i32) -> (i32, i32) {
    %c0_i32 = arith.constant 0 : i32
    %c0_i32_0 = arith.constant 0 : i32
    %c0_i32_1 = arith.constant 0 : i32
    return %c0_i32, %c0_i32_0 : i32, i32
  }
  func.func @transform_8(%arg0: i32) -> (i32, i32) {
    %c0_i32 = arith.constant 0 : i32
    %c0_i32_0 = arith.constant 0 : i32
    %c0_i32_1 = arith.constant 0 : i32
    return %c0_i32, %c0_i32_0 : i32, i32
  }
  func.func @transform_9(%arg0: i32) -> (i32, i32) {
    %c0_i32 = arith.constant 0 : i32
    %c0_i32_0 = arith.constant 0 : i32
    %c0_i32_1 = arith.constant 0 : i32
    return %c0_i32, %c0_i32_0 : i32, i32
  }
  func.func @transform_10(%arg0: i32) -> (i32, i32) {
    %c0_i32 = arith.constant 0 : i32
    %c0_i32_0 = arith.constant 0 : i32
    %c0_i32_1 = arith.constant 0 : i32
    return %c0_i32, %c0_i32_0 : i32, i32
  }
  func.func @transform_11(%arg0: i32) -> (i32, i32) {
    %c0_i32 = arith.constant 0 : i32
    %c0_i32_0 = arith.constant 0 : i32
    %c0_i32_1 = arith.constant 0 : i32
    return %c0_i32, %c0_i32_0 : i32, i32
  }
  func.func @transform_12(%arg0: i32) -> (i32, i32) {
    %c0_i32 = arith.constant 0 : i32
    %c0_i32_0 = arith.constant 0 : i32
    %c0_i32_1 = arith.constant 0 : i32
    return %c0_i32, %c0_i32_0 : i32, i32
  }
  func.func @transform_13(%arg0: i32) -> (i32, i32) {
    %c0_i32 = arith.constant 0 : i32
    %c0_i32_0 = arith.constant 0 : i32
    %c0_i32_1 = arith.constant 0 : i32
    return %c0_i32, %c0_i32_0 : i32, i32
  }
  func.func @transform_14(%arg0: i32) -> (i32, i32, i32) {
    %c0_i32 = arith.constant 0 : i32
    %c0_i32_0 = arith.constant 0 : i32
    %c0_i32_1 = arith.constant 0 : i32
    return %arg0, %c0_i32, %c0_i32_0 : i32, i32, i32
  }
}

</mosaic_0001>

<llo_original>
// kernel: tpu_custom_call.1
$region0: #{tpu_custom_call.1}
  #allocation0 [shape = 'u32[]', space=smem, size = 0x4, offset = 0x4, fixed_abs, tag = 'smem constant byte address 0x4 - core index']
  #allocation1 [shape = 'u32[144,128]{1,0:T(1,128)}', space=vmem, size = 0x12000, scoped, tag = 'internal scratch']
  #allocation2 [shape = 'bf16[144,32]{1,0:T(8,128)(2,1)}', space=vmem, size = 0x9000, scoped, tag = 'scratch operand']
  %s0 = inlined_call_operand.vmem [shape: f32[2,16,384], index: 0, kind: input, shape index: {}]
  %s1 = inlined_call_operand.vmem [shape: f32[2,64,32], index: 1, kind: input, shape index: {}]
  %s2 = inlined_call_operand.vmem [shape: f32[1,384], index: 2, kind: input, shape index: {}]
  %s3 = inlined_call_operand.vmem [shape: f32[1,384], index: 3, kind: input, shape index: {}]
  %s4 = inlined_call_operand.vmem [shape: bf16[384,32], index: 4, kind: input, shape index: {}]
  %s5 = inlined_call_operand.vmem [shape: f32[1,32], index: 5, kind: input, shape index: {}]
  %s6 = inlined_call_operand.vmem [shape: bf16[32,288], index: 6, kind: input, shape index: {}]
  %s7 = inlined_call_operand.vmem [shape: bf16[64,144], index: 7, kind: input, shape index: {}]
  %s8 = inlined_call_operand.vmem [shape: f32[64,32], index: 8, kind: input, shape index: {}]
  %s9 = inlined_call_operand.vmem [shape: bf16[32,32], index: 9, kind: input, shape index: {}]
  %s10 = inlined_call_operand.vmem [shape: bf16[32,32], index: 10, kind: input, shape index: {}]
  %s11 = inlined_call_operand.vmem [shape: f32[1,32], index: 11, kind: input, shape index: {}]
  %s12 = inlined_call_operand.vmem [shape: bf16[32,32], index: 12, kind: input, shape index: {}]
  %s13 = inlined_call_operand.vmem [shape: f32[1,32], index: 13, kind: input, shape index: {}]
  %s14 = inlined_call_operand.vmem [shape: f32[2,64,32], index: 14, kind: output, shape index: {}]
  %s15 = sld [smem:[#allocation0]]
  $region89: #{tpu_custom_call.1} parent=0
    _
  %s17 = ssub.s32 1, %s15
  %s18 = scalar_select 0, %s17, %s15
  loop: start=0, step=1, limit=4
  $region2: #{tpu_custom_call.1} parent=0 // loop_pre_header
    _
  $region3: #{tpu_custom_call.1} parent=0 // loop_header
    %s20 = sphi 0, %s24
    %p21 = scmp.ge.s32.totalorder %s20, 4
    %s30 = sphi 0, %s32
    %s33 = sphi 0, %s30
    %s34 = sphi 0, %s33
    %s50 = sphi 0, %s34
    %s56 = sphi 0, %s58
    %s59 = sphi 0, %s56
    %s60 = sphi 0, %s59
    %s76 = sphi 0, %s60
    %s80 = sphi 0, %s80
    %s82 = sphi 0, %s80
    %s83 = sphi 0, %s82
    %s97 = sphi 0, %s83
    %s101 = sphi 0, %s101
    %s103 = sphi 0, %s101
    %s104 = sphi 0, %s103
    %s118 = sphi 0, %s104
    %s122 = sphi 0, %s122
    %s124 = sphi 0, %s122
    %s125 = sphi 0, %s124
    %s139 = sphi 0, %s125
    %s143 = sphi 0, %s143
    %s145 = sphi 0, %s143
    %s146 = sphi 0, %s145
    %s160 = sphi 0, %s146
    %s164 = sphi 0, %s164
    %s166 = sphi 0, %s164
    %s167 = sphi 0, %s166
    %s181 = sphi 0, %s167
    %s185 = sphi 0, %s185
    %s187 = sphi 0, %s185
    %s188 = sphi 0, %s187
    %s202 = sphi 0, %s188
    %s206 = sphi 0, %s206
    %s208 = sphi 0, %s206
    %s209 = sphi 0, %s208
    %s223 = sphi 0, %s209
    %s227 = sphi 0, %s227
    %s229 = sphi 0, %s227
    %s230 = sphi 0, %s229
    %s244 = sphi 0, %s230
    %s248 = sphi 0, %s248
    %s250 = sphi 0, %s248
    %s251 = sphi 0, %s250
    %s265 = sphi 0, %s251
    %s269 = sphi 0, %s269
    %s271 = sphi 0, %s269
    %s272 = sphi 0, %s271
    %s286 = sphi 0, %s272
    %s290 = sphi 0, %s290
    %s292 = sphi 0, %s290
    %s293 = sphi 0, %s292
    %s307 = sphi 0, %s293
    %s311 = sphi 0, %s311
    %s313 = sphi 0, %s311
    %s314 = sphi 0, %s313
    %s328 = sphi 0, %s314
    %s334 = sphi 0, %s336
    %s337 = sphi 0, %s334
    %s338 = sphi 0, %s337
    %s354 = sphi 0, %s338
  $region4: #{tpu_custom_call.1} parent=0 // loop_header_branch
    %23 = sbr.rel (%p21) target = $region8
  $region5: #{tpu_custom_call.1} parent=0 // loop_body
    %s25 = ssub.s32 %s20, 1
    %s26 = ssub.s32 %s20, 2
    %s27 = sadd.s32 %s20, 1
    %s28 = ssub.s32 %s20, %s27
    %p29 = scmp.eq.s32.totalorder %s28, 0
    %s31 = sadd.s32 %s30, 1
    %s32 = scalar_select %p29, %s30, %s31
    %p35 = pneg %p29
    %p36 = scmp.eq.s32.totalorder %s20, 1
    %p37 = por %p35, %p36
    %p38 = scmp.ne.s32.totalorder %s30, %s33
    %p39 = scmp.eq.s32.totalorder %s20, 0
    %p40 = por %p38, %p39
    %p41 = scmp.ne.s32.totalorder %s30, %s33
    %p42 = scmp.eq.s32.totalorder %s25, 1
    %p43 = por %p41, %p42
    %p44 = scmp.ne.s32.totalorder %s33, %s34
    %p45 = scmp.eq.s32.totalorder %s25, 0
    %p46 = por %p44, %p45
    %p47 = scmp.ne.s32.totalorder %s33, %s34
    %p48 = scmp.eq.s32.totalorder %s26, 1
    %p49 = por %p47, %p48
    %p51 = scmp.ne.s32.totalorder %s34, %s50
    %p52 = scmp.eq.s32.totalorder %s26, 0
    %p53 = por %p51, %p52
    %s54 = ssub.s32 %s20, %s27
    %p55 = scmp.eq.s32.totalorder %s54, 0
    %s57 = sadd.s32 %s56, 1
    %s58 = scalar_select %p55, %s56, %s57
    %p61 = pneg %p55
    %p62 = scmp.eq.s32.totalorder %s20, 1
    %p63 = por %p61, %p62
    %p64 = scmp.ne.s32.totalorder %s56, %s59
    %p65 = scmp.eq.s32.totalorder %s20, 0
    %p66 = por %p64, %p65
    %p67 = scmp.ne.s32.totalorder %s56, %s59
    %p68 = scmp.eq.s32.totalorder %s25, 1
    %p69 = por %p67, %p68
    %p70 = scmp.ne.s32.totalorder %s59, %s60
    %p71 = scmp.eq.s32.totalorder %s25, 0
    %p72 = por %p70, %p71
    %p73 = scmp.ne.s32.totalorder %s59, %s60
    %p74 = scmp.eq.s32.totalorder %s26, 1
    %p75 = por %p73, %p74
    %p77 = scmp.ne.s32.totalorder %s60, %s76
    %p78 = scmp.eq.s32.totalorder %s26, 0
    %p79 = por %p77, %p78
    %s81 = sadd.s32 %s80, 1
    %p84 = scmp.eq.s32.totalorder %s20, 1
    %p85 = scmp.ne.s32.totalorder %s80, %s82
    %p86 = scmp.eq.s32.totalorder %s20, 0
    %p87 = por %p85, %p86
    %p88 = scmp.ne.s32.totalorder %s80, %s82
    %p89 = scmp.eq.s32.totalorder %s25, 1
    %p90 = por %p88, %p89
    %p91 = scmp.ne.s32.totalorder %s82, %s83
    %p92 = scmp.eq.s32.totalorder %s25, 0
    %p93 = por %p91, %p92
    %p94 = scmp.ne.s32.totalorder %s82, %s83
    %p95 = scmp.eq.s32.totalorder %s26, 1
    %p96 = por %p94, %p95
    %p98 = scmp.ne.s32.totalorder %s83, %s97
    %p99 = scmp.eq.s32.totalorder %s26, 0
    %p100 = por %p98, %p99
    %s102 = sadd.s32 %s101, 1
    %p105 = scmp.eq.s32.totalorder %s20, 1
    %p106 = scmp.ne.s32.totalorder %s101, %s103
    %p107 = scmp.eq.s32.totalorder %s20, 0
    %p108 = por %p106, %p107
    %p109 = scmp.ne.s32.totalorder %s101, %s103
    %p110 = scmp.eq.s32.totalorder %s25, 1
    %p111 = por %p109, %p110
    %p112 = scmp.ne.s32.totalorder %s103, %s104
    %p113 = scmp.eq.s32.totalorder %s25, 0
    %p114 = por %p112, %p113
    %p115 = scmp.ne.s32.totalorder %s103, %s104
    %p116 = scmp.eq.s32.totalorder %s26, 1
    %p117 = por %p115, %p116
    %p119 = scmp.ne.s32.totalorder %s104, %s118
    %p120 = scmp.eq.s32.totalorder %s26, 0
    %p121 = por %p119, %p120
    %s123 = sadd.s32 %s122, 1
    %p126 = scmp.eq.s32.totalorder %s20, 1
    %p127 = scmp.ne.s32.totalorder %s122, %s124
    %p128 = scmp.eq.s32.totalorder %s20, 0
    %p129 = por %p127, %p128
    %p130 = scmp.ne.s32.totalorder %s122, %s124
    %p131 = scmp.eq.s32.totalorder %s25, 1
    %p132 = por %p130, %p131
    %p133 = scmp.ne.s32.totalorder %s124, %s125
    %p134 = scmp.eq.s32.totalorder %s25, 0
    %p135 = por %p133, %p134
    %p136 = scmp.ne.s32.totalorder %s124, %s125
    %p137 = scmp.eq.s32.totalorder %s26, 1
    %p138 = por %p136, %p137
    %p140 = scmp.ne.s32.totalorder %s125, %s139
    %p141 = scmp.eq.s32.totalorder %s26, 0
    %p142 = por %p140, %p141
    %s144 = sadd.s32 %s143, 1
    %p147 = scmp.eq.s32.totalorder %s20, 1
    %p148 = scmp.ne.s32.totalorder %s143, %s145
    %p149 = scmp.eq.s32.totalorder %s20, 0
    %p150 = por %p148, %p149
    %p151 = scmp.ne.s32.totalorder %s143, %s145
    %p152 = scmp.eq.s32.totalorder %s25, 1
    %p153 = por %p151, %p152
    %p154 = scmp.ne.s32.totalorder %s145, %s146
    %p155 = scmp.eq.s32.totalorder %s25, 0
    %p156 = por %p154, %p155
    %p157 = scmp.ne.s32.totalorder %s145, %s146
    %p158 = scmp.eq.s32.totalorder %s26, 1
    %p159 = por %p157, %p158
    %p161 = scmp.ne.s32.totalorder %s146, %s160
    %p162 = scmp.eq.s32.totalorder %s26, 0
    %p163 = por %p161, %p162
    %s165 = sadd.s32 %s164, 1
    %p168 = scmp.eq.s32.totalorder %s20, 1
    %p169 = scmp.ne.s32.totalorder %s164, %s166
    %p170 = scmp.eq.s32.totalorder %s20, 0
    %p171 = por %p169, %p170
    %p172 = scmp.ne.s32.totalorder %s164, %s166
    %p173 = scmp.eq.s32.totalorder %s25, 1
    %p174 = por %p172, %p173
    %p175 = scmp.ne.s32.totalorder %s166, %s167
    %p176 = scmp.eq.s32.totalorder %s25, 0
    %p177 = por %p175, %p176
    %p178 = scmp.ne.s32.totalorder %s166, %s167
    %p179 = scmp.eq.s32.totalorder %s26, 1
    %p180 = por %p178, %p179
    %p182 = scmp.ne.s32.totalorder %s167, %s181
    %p183 = scmp.eq.s32.totalorder %s26, 0
    %p184 = por %p182, %p183
    %s186 = sadd.s32 %s185, 1
    %p189 = scmp.eq.s32.totalorder %s20, 1
    %p190 = scmp.ne.s32.totalorder %s185, %s187
    %p191 = scmp.eq.s32.totalorder %s20, 0
    %p192 = por %p190, %p191
    %p193 = scmp.ne.s32.totalorder %s185, %s187
    %p194 = scmp.eq.s32.totalorder %s25, 1
    %p195 = por %p193, %p194
    %p196 = scmp.ne.s32.totalorder %s187, %s188
    %p197 = scmp.eq.s32.totalorder %s25, 0
    %p198 = por %p196, %p197
    %p199 = scmp.ne.s32.totalorder %s187, %s188
    %p200 = scmp.eq.s32.totalorder %s26, 1
    %p201 = por %p199, %p200
    %p203 = scmp.ne.s32.totalorder %s188, %s202
    %p204 = scmp.eq.s32.totalorder %s26, 0
    %p205 = por %p203, %p204
    %s207 = sadd.s32 %s206, 1
    %p210 = scmp.eq.s32.totalorder %s20, 1
    %p211 = scmp.ne.s32.totalorder %s206, %s208
    %p212 = scmp.eq.s32.totalorder %s20, 0
    %p213 = por %p211, %p212
    %p214 = scmp.ne.s32.totalorder %s206, %s208
    %p215 = scmp.eq.s32.totalorder %s25, 1
    %p216 = por %p214, %p215
    %p217 = scmp.ne.s32.totalorder %s208, %s209
    %p218 = scmp.eq.s32.totalorder %s25, 0
    %p219 = por %p217, %p218
    %p220 = scmp.ne.s32.totalorder %s208, %s209
    %p221 = scmp.eq.s32.totalorder %s26, 1
    %p222 = por %p220, %p221
    %p224 = scmp.ne.s32.totalorder %s209, %s223
    %p225 = scmp.eq.s32.totalorder %s26, 0
    %p226 = por %p224, %p225
    %s228 = sadd.s32 %s227, 1
    %p231 = scmp.eq.s32.totalorder %s20, 1
    %p232 = scmp.ne.s32.totalorder %s227, %s229
    %p233 = scmp.eq.s32.totalorder %s20, 0
    %p234 = por %p232, %p233
    %p235 = scmp.ne.s32.totalorder %s227, %s229
    %p236 = scmp.eq.s32.totalorder %s25, 1
    %p237 = por %p235, %p236
    %p238 = scmp.ne.s32.totalorder %s229, %s230
    %p239 = scmp.eq.s32.totalorder %s25, 0
    %p240 = por %p238, %p239
    %p241 = scmp.ne.s32.totalorder %s229, %s230
    %p242 = scmp.eq.s32.totalorder %s26, 1
    %p243 = por %p241, %p242
    %p245 = scmp.ne.s32.totalorder %s230, %s244
    %p246 = scmp.eq.s32.totalorder %s26, 0
    %p247 = por %p245, %p246
    %s249 = sadd.s32 %s248, 1
    %p252 = scmp.eq.s32.totalorder %s20, 1
    %p253 = scmp.ne.s32.totalorder %s248, %s250
    %p254 = scmp.eq.s32.totalorder %s20, 0
    %p255 = por %p253, %p254
    %p256 = scmp.ne.s32.totalorder %s248, %s250
    %p257 = scmp.eq.s32.totalorder %s25, 1
    %p258 = por %p256, %p257
    %p259 = scmp.ne.s32.totalorder %s250, %s251
    %p260 = scmp.eq.s32.totalorder %s25, 0
    %p261 = por %p259, %p260
    %p262 = scmp.ne.s32.totalorder %s250, %s251
    %p263 = scmp.eq.s32.totalorder %s26, 1
    %p264 = por %p262, %p263
    %p266 = scmp.ne.s32.totalorder %s251, %s265
    %p267 = scmp.eq.s32.totalorder %s26, 0
    %p268 = por %p266, %p267
    %s270 = sadd.s32 %s269, 1
    %p273 = scmp.eq.s32.totalorder %s20, 1
    %p274 = scmp.ne.s32.totalorder %s269, %s271
    %p275 = scmp.eq.s32.totalorder %s20, 0
    %p276 = por %p274, %p275
    %p277 = scmp.ne.s32.totalorder %s269, %s271
    %p278 = scmp.eq.s32.totalorder %s25, 1
    %p279 = por %p277, %p278
    %p280 = scmp.ne.s32.totalorder %s271, %s272
    %p281 = scmp.eq.s32.totalorder %s25, 0
    %p282 = por %p280, %p281
    %p283 = scmp.ne.s32.totalorder %s271, %s272
    %p284 = scmp.eq.s32.totalorder %s26, 1
    %p285 = por %p283, %p284
    %p287 = scmp.ne.s32.totalorder %s272, %s286
    %p288 = scmp.eq.s32.totalorder %s26, 0
    %p289 = por %p287, %p288
    %s291 = sadd.s32 %s290, 1
    %p294 = scmp.eq.s32.totalorder %s20, 1
    %p295 = scmp.ne.s32.totalorder %s290, %s292
    %p296 = scmp.eq.s32.totalorder %s20, 0
    %p297 = por %p295, %p296
    %p298 = scmp.ne.s32.totalorder %s290, %s292
    %p299 = scmp.eq.s32.totalorder %s25, 1
    %p300 = por %p298, %p299
    %p301 = scmp.ne.s32.totalorder %s292, %s293
    %p302 = scmp.eq.s32.totalorder %s25, 0
    %p303 = por %p301, %p302
    %p304 = scmp.ne.s32.totalorder %s292, %s293
    %p305 = scmp.eq.s32.totalorder %s26, 1
    %p306 = por %p304, %p305
    %p308 = scmp.ne.s32.totalorder %s293, %s307
    %p309 = scmp.eq.s32.totalorder %s26, 0
    %p310 = por %p308, %p309
    %s312 = sadd.s32 %s311, 1
    %p315 = scmp.eq.s32.totalorder %s20, 1
    %p316 = scmp.ne.s32.totalorder %s311, %s313
    %p317 = scmp.eq.s32.totalorder %s20, 0
    %p318 = por %p316, %p317
    %p319 = scmp.ne.s32.totalorder %s311, %s313
    %p320 = scmp.eq.s32.totalorder %s25, 1
    %p321 = por %p319, %p320
    %p322 = scmp.ne.s32.totalorder %s313, %s314
    %p323 = scmp.eq.s32.totalorder %s25, 0
    %p324 = por %p322, %p323
    %p325 = scmp.ne.s32.totalorder %s313, %s314
    %p326 = scmp.eq.s32.totalorder %s26, 1
    %p327 = por %p325, %p326
    %p329 = scmp.ne.s32.totalorder %s314, %s328
    %p330 = scmp.eq.s32.totalorder %s26, 0
    %p331 = por %p329, %p330
    %s332 = ssub.s32 %s20, %s27
    %p333 = scmp.eq.s32.totalorder %s332, 0
    %s335 = sadd.s32 %s334, 1
    %s336 = scalar_select %p333, %s334, %s335
    %p339 = pneg %p333
    %p340 = scmp.eq.s32.totalorder %s20, 1
    %p341 = por %p339, %p340
    %p342 = scmp.ne.s32.totalorder %s334, %s337
    %p343 = scmp.eq.s32.totalorder %s20, 0
    %p344 = por %p342, %p343
    %p345 = scmp.ne.s32.totalorder %s334, %s337
    %p346 = scmp.eq.s32.totalorder %s25, 1
    %p347 = por %p345, %p346
    %p348 = scmp.ne.s32.totalorder %s337, %s338
    %p349 = scmp.eq.s32.totalorder %s25, 0
    %p350 = por %p348, %p349
    %p351 = scmp.ne.s32.totalorder %s337, %s338
    %p352 = scmp.eq.s32.totalorder %s26, 1
    %p353 = por %p351, %p352
    %p355 = scmp.ne.s32.totalorder %s338, %s354
    %p356 = scmp.eq.s32.totalorder %s26, 0
    %p357 = por %p355, %p356
    %p358 = scmp.le.s32.totalorder 1, %s20
    %p359 = scmp.lt.s32.totalorder %s20, 3
    %p360 = pnand %p358, %p359
    %p361 = pneg %p360
    // Predicated region
    $region9: #{tpu_custom_call.1} parent=5 // pred_check
      _
    $region10: #{tpu_custom_call.1} parent=5 // pred_check_branch
      %363 = sbr.rel (%p360) target = $region12
    $region11: #{tpu_custom_call.1} parent=5 // pred_region
      %s364 = ssub.s32 %s20, 1
      // Predicated region
      $region13: #{tpu_custom_call.1} parent=11 // pred_check
        %p365 = pneg %p93
      $region14: #{tpu_custom_call.1} parent=11 // pred_check_branch
        %367 = sbr.rel (%p365) target = $region16
      $region15: #{tpu_custom_call.1} parent=11 // pred_region
        _
      $region16: #{tpu_custom_call.1} parent=11 // pred_fallthru
        _
      // Predicated region
      $region17: #{tpu_custom_call.1} parent=11 // pred_check
        %p368 = pneg %p114
      $region18: #{tpu_custom_call.1} parent=11 // pred_check_branch
        %370 = sbr.rel (%p368) target = $region20
      $region19: #{tpu_custom_call.1} parent=11 // pred_region
        _
      $region20: #{tpu_custom_call.1} parent=11 // pred_fallthru
        _
      // Predicated region
      $region21: #{tpu_custom_call.1} parent=11 // pred_check
        %p371 = pneg %p135
      $region22: #{tpu_custom_call.1} parent=11 // pred_check_branch
        %373 = sbr.rel (%p371) target = $region24
      $region23: #{tpu_custom_call.1} parent=11 // pred_region
        _
      $region24: #{tpu_custom_call.1} parent=11 // pred_fallthru
        _
      // Predicated region
      $region25: #{tpu_custom_call.1} parent=11 // pred_check
        %p374 = pneg %p156
      $region26: #{tpu_custom_call.1} parent=11 // pred_check_branch
        %376 = sbr.rel (%p374) target = $region28
      $region27: #{tpu_custom_call.1} parent=11 // pred_region
        _
      $region28: #{tpu_custom_call.1} parent=11 // pred_fallthru
        _
      // Predicated region
      $region29: #{tpu_custom_call.1} parent=11 // pred_check
        %p377 = pneg %p177
      $region30: #{tpu_custom_call.1} parent=11 // pred_check_branch
        %379 = sbr.rel (%p377) target = $region32
      $region31: #{tpu_custom_call.1} parent=11 // pred_region
        _
      $region32: #{tpu_custom_call.1} parent=11 // pred_fallthru
        _
      // Predicated region
      $region33: #{tpu_custom_call.1} parent=11 // pred_check
        %p380 = pneg %p198
      $region34: #{tpu_custom_call.1} parent=11 // pred_check_branch
        %382 = sbr.rel (%p380) target = $region36
      $region35: #{tpu_custom_call.1} parent=11 // pred_region
        _
      $region36: #{tpu_custom_call.1} parent=11 // pred_fallthru
        _
      // Predicated region
      $region37: #{tpu_custom_call.1} parent=11 // pred_check
        %p383 = pneg %p219
      $region38: #{tpu_custom_call.1} parent=11 // pred_check_branch
        %385 = sbr.rel (%p383) target = $region40
      $region39: #{tpu_custom_call.1} parent=11 // pred_region
        _
      $region40: #{tpu_custom_call.1} parent=11 // pred_fallthru
        _
      // Predicated region
      $region41: #{tpu_custom_call.1} parent=11 // pred_check
        %p386 = pneg %p240
      $region42: #{tpu_custom_call.1} parent=11 // pred_check_branch
        %388 = sbr.rel (%p386) target = $region44
      $region43: #{tpu_custom_call.1} parent=11 // pred_region
        _
      $region44: #{tpu_custom_call.1} parent=11 // pred_fallthru
        _
      // Predicated region
      $region45: #{tpu_custom_call.1} parent=11 // pred_check
        %p389 = pneg %p261
      $region46: #{tpu_custom_call.1} parent=11 // pred_check_branch
        %391 = sbr.rel (%p389) target = $region48
      $region47: #{tpu_custom_call.1} parent=11 // pred_region
        _
      $region48: #{tpu_custom_call.1} parent=11 // pred_fallthru
        _
      // Predicated region
      $region49: #{tpu_custom_call.1} parent=11 // pred_check
        %p392 = pneg %p282
      $region50: #{tpu_custom_call.1} parent=11 // pred_check_branch
        %394 = sbr.rel (%p392) target = $region52
      $region51: #{tpu_custom_call.1} parent=11 // pred_region
        _
      $region52: #{tpu_custom_call.1} parent=11 // pred_fallthru
        _
      // Predicated region
      $region53: #{tpu_custom_call.1} parent=11 // pred_check
        %p395 = pneg %p303
      $region54: #{tpu_custom_call.1} parent=11 // pred_check_branch
        %397 = sbr.rel (%p395) target = $region56
      $region55: #{tpu_custom_call.1} parent=11 // pred_region
        _
      $region56: #{tpu_custom_call.1} parent=11 // pred_fallthru
        _
      // Predicated region
      $region57: #{tpu_custom_call.1} parent=11 // pred_check
        %p398 = pneg %p324
      $region58: #{tpu_custom_call.1} parent=11 // pred_check_branch
        %400 = sbr.rel (%p398) target = $region60
      $region59: #{tpu_custom_call.1} parent=11 // pred_region
        _
      $region60: #{tpu_custom_call.1} parent=11 // pred_fallthru
        _
    $region12: #{tpu_custom_call.1} parent=5 // pred_fallthru
      _
    %p401 = scmp.lt.s32.totalorder %s20, 2
    // Predicated region
    $region61: #{tpu_custom_call.1} parent=5 // pred_check
      %p402 = pneg %p401
    $region62: #{tpu_custom_call.1} parent=5 // pred_check_branch
      %404 = sbr.rel (%p402) target = $region64
    $region63: #{tpu_custom_call.1} parent=5 // pred_region
      // Predicated region
      $region65: #{tpu_custom_call.1} parent=63 // pred_check
        %p405 = pneg %p40
      $region66: #{tpu_custom_call.1} parent=63 // pred_check_branch
        %407 = sbr.rel (%p405) target = $region68
      $region67: #{tpu_custom_call.1} parent=63 // pred_region
        %p408 = scmp.lt.s32.totalorder %s20, 1
        %s409 = scalar_select %p408, %s20, 1
        %s410 = smul.addr %s409, 6
        %s411 = smul.addr %s410, 8
        %s412 = scalar_lea.vmem %s0, %s411
      $region68: #{tpu_custom_call.1} parent=63 // pred_fallthru
        _
      // Predicated region
      $region69: #{tpu_custom_call.1} parent=63 // pred_check
        %p413 = pneg %p66
      $region70: #{tpu_custom_call.1} parent=63 // pred_check_branch
        %415 = sbr.rel (%p413) target = $region72
      $region71: #{tpu_custom_call.1} parent=63 // pred_region
        %p416 = scmp.lt.s32.totalorder %s20, 1
        %s417 = scalar_select %p416, %s20, 1
        %s418 = smul.addr %s417, 8
        %s419 = smul.addr %s418, 8
        %s420 = scalar_lea.vmem %s1, %s419
      $region72: #{tpu_custom_call.1} parent=63 // pred_fallthru
        _
    $region64: #{tpu_custom_call.1} parent=5 // pred_fallthru
      _
    %p421 = scmp.le.s32.totalorder 1, %s20
    %p422 = scmp.lt.s32.totalorder %s20, 3
    %p423 = pnand %p421, %p422
    %p424 = pneg %p423
    // Predicated region
    $region73: #{tpu_custom_call.1} parent=5 // pred_check
      _
    $region74: #{tpu_custom_call.1} parent=5 // pred_check_branch
      %426 = sbr.rel (%p423) target = $region76
    $region75: #{tpu_custom_call.1} parent=5 // pred_region
      %s427 = ssub.s32 %s20, 1
      %p428 = scmp.lt.s32.totalorder %s25, 1
      %s429 = scalar_select %p428, %s25, 1
      %s430 = smul.addr %s429, 6
      %s431 = smul.addr %s430, 8
      %s432 = scalar_lea.vmem %s0, %s431
      %p433 = pneg %p46
      %p434 = pneg %p43
      %p435 = scmp.lt.s32.totalorder %s25, 1
      %s436 = scalar_select %p435, %s25, 1
      %s437 = smul.addr %s436, 8
      %s438 = smul.addr %s437, 8
      %s439 = scalar_lea.vmem %s1, %s438
      %p440 = pneg %p72
      %p441 = pneg %p69
      %p442 = pneg %p93
      %p443 = pneg %p90
      %p444 = pneg %p114
      %p445 = pneg %p111
      %p446 = pneg %p135
      %p447 = pneg %p132
      %p448 = pneg %p156
      %p449 = pneg %p153
      %p450 = pneg %p177
      %p451 = pneg %p174
      %p452 = pneg %p198
      %p453 = pneg %p195
      %p454 = pneg %p219
      %p455 = pneg %p216
      %p456 = pneg %p240
      %p457 = pneg %p237
      %p458 = pneg %p261
      %p459 = pneg %p258
      %p460 = pneg %p282
      %p461 = pneg %p279
      %p462 = pneg %p303
      %p463 = pneg %p300
      %p464 = pneg %p324
      %p465 = pneg %p321
      %p466 = pneg %p350
      %p467 = pneg %p347
      %p468 = scmp.lt.s32.totalorder %s25, 1
      %s469 = scalar_select %p468, %s25, 1
      %s470 = smul.addr %s469, 8
      %s471 = smul.addr %s470, 8
      %s472 = scalar_lea.vmem %s14, %s471
      %p473 = scmp.lt.s32.totalorder %s25, 1
      %s474 = scalar_select %p473, %s25, 1
      %s475 = smul.addr %s474, 6
      %s476 = smul.addr %s475, 8
      %s477 = scalar_lea.vmem %s0, %s476
      %p478 = scmp.lt.s32.totalorder %s25, 1
      %s479 = scalar_select %p478, %s25, 1
      %s480 = smul.addr %s479, 8
      %s481 = smul.addr %s480, 8
      %s482 = scalar_lea.vmem %s1, %s481
      %p483 = scmp.lt.s32.totalorder %s25, 1
      %s484 = scalar_select %p483, %s25, 1
      %s485 = smul.addr %s484, 8
      %s486 = smul.addr %s485, 8
      %s487 = scalar_lea.vmem %s14, %s486
      %v489 = vld [vmem:[%s477] sm:$0xff]
      %v490 = vld [vmem:[%s477 + $0x8] sm:$0xff]
      %v491 = vld [vmem:[%s477 + $0x10] sm:$0xff]
      %v492 = vld [vmem:[%s477 + $0x18] sm:$0xff]
      %v493 = vld [vmem:[%s477 + $0x20] sm:$0xff]
      %v494 = vld [vmem:[%s477 + $0x28] sm:$0xff]
      %v495 = vadd.f32 %v489, %v490
      %v496 = vadd.f32 %v495, %v491
      %497 = vadd.xlane.f32.xlu0 %v496
      %v498 = vpop.xlane.xlu0 %497
      %v499 = vadd.f32 %v492, %v493
      %v500 = vadd.f32 %v499, %v494
      %501 = vadd.xlane.f32.xlu0 %v500
      %v502 = vpop.xlane.xlu0 %501
      %v503 = vrcp.pop 384.0
      %v504 = vmul.f32 %v498, %v503
      %v505 = vmul.f32 %v502, %v503
      %v506 = vsub.f32 %v489, %v504
      %v507 = vsub.f32 %v490, %v504
      %v508 = vsub.f32 %v491, %v504
      %v509 = vsub.f32 %v492, %v505
      %v510 = vsub.f32 %v493, %v505
      %v511 = vsub.f32 %v494, %v505
      %v512 = vmul.f32 %v506, %v506
      %v513 = vmul.f32 %v507, %v507
      %v514 = vmul.f32 %v508, %v508
      %v515 = vmul.f32 %v509, %v509
      %v516 = vmul.f32 %v510, %v510
      %v517 = vmul.f32 %v511, %v511
      %v518 = vadd.f32 %v512, %v513
      %v519 = vadd.f32 %v518, %v514
      %520 = vadd.xlane.f32.xlu0 %v519
      %v521 = vpop.xlane.xlu0 %520
      %v522 = vadd.f32 %v515, %v516
      %v523 = vadd.f32 %v522, %v517
      %524 = vadd.xlane.f32.xlu0 %v523
      %v525 = vpop.xlane.xlu0 %524
      %v526 = vmul.f32 %v521, %v503
      %v527 = vmul.f32 %v525, %v503
      %v528 = vadd.f32 %v526, 1e-05
      %v529 = vadd.f32 %v527, 1e-05
      %v530 = vrsqrt.pop %v528
      %v531 = vrsqrt.pop %v529
      %v532 = vmul.f32 %v506, %v530
      %v533 = vmul.f32 %v507, %v530
      %v534 = vmul.f32 %v508, %v530
      %v535 = vmul.f32 %v509, %v531
      %v536 = vmul.f32 %v510, %v531
      %v537 = vmul.f32 %v511, %v531
      %v538 = vld [vmem:[%s2] sm:$0x7]
      %v540 = vlaneseq
      %v541 = vshrl.u32 %v540, 7
      %v542 = vsub.s32 0, %v541
      %v543 = vrot.slane %v538, %v542
      %v544 = vlaneseq
      %v545 = vshrl.u32 %v544, 7
      %v546 = vsub.s32 1, %v545
      %v547 = vrot.slane %v538, %v546
      %v548 = vlaneseq
      %v549 = vshrl.u32 %v548, 7
      %v550 = vsub.s32 2, %v549
      %v551 = vrot.slane %v538, %v550
      %v555 = vmul.f32 %v532, %v543
      %v556 = vmul.f32 %v533, %v547
      %v557 = vmul.f32 %v534, %v551
      %v558 = vmul.f32 %v535, %v543
      %v559 = vmul.f32 %v536, %v547
      %v560 = vmul.f32 %v537, %v551
      %v561 = vld [vmem:[%s3] sm:$0x7]
      %v563 = vlaneseq
      %v564 = vshrl.u32 %v563, 7
      %v565 = vsub.s32 0, %v564
      %v566 = vrot.slane %v561, %v565
      %v567 = vlaneseq
      %v568 = vshrl.u32 %v567, 7
      %v569 = vsub.s32 1, %v568
      %v570 = vrot.slane %v561, %v569
      %v571 = vlaneseq
      %v572 = vshrl.u32 %v571, 7
      %v573 = vsub.s32 2, %v572
      %v574 = vrot.slane %v561, %v573
      %v578 = vadd.f32 %v555, %v566
      %v579 = vadd.f32 %v556, %v570
      %v580 = vadd.f32 %v557, %v574
      %v581 = vadd.f32 %v558, %v566
      %v582 = vadd.f32 %v559, %v570
      %v583 = vadd.f32 %v560, %v574
      %v584 = vpack.c.bf16 %v581, %v578
      %v585 = vpack.c.bf16 %v582, %v579
      %v586 = vpack.c.bf16 %v583, %v580
      %v587 = vld [vmem:[%s4] sm:$0xf]
      %v588 = vld [vmem:[%s4 + $0x4] sm:$0xf]
      %v589 = vld [vmem:[%s4 + $0x8] sm:$0xf]
      %v590 = vld [vmem:[%s4 + $0xc] sm:$0xf]
      %v591 = vld [vmem:[%s4 + $0x10] sm:$0xf]
      %v592 = vld [vmem:[%s4 + $0x14] sm:$0xf]
      %v593 = vld [vmem:[%s4 + $0x18] sm:$0xf]
      %v594 = vld [vmem:[%s4 + $0x1c] sm:$0xf]
      %v595 = vld [vmem:[%s4 + $0x20] sm:$0xf]
      %v596 = vld [vmem:[%s4 + $0x24] sm:$0xf]
      %v597 = vld [vmem:[%s4 + $0x28] sm:$0xf]
      %v598 = vld [vmem:[%s4 + $0x2c] sm:$0xf]
      %v599 = vld [vmem:[%s4 + $0x30] sm:$0xf]
      %v600 = vld [vmem:[%s4 + $0x34] sm:$0xf]
      %v601 = vld [vmem:[%s4 + $0x38] sm:$0xf]
      %v602 = vld [vmem:[%s4 + $0x3c] sm:$0xf]
      %v603 = vld [vmem:[%s4 + $0x40] sm:$0xf]
      %v604 = vld [vmem:[%s4 + $0x44] sm:$0xf]
      %v605 = vld [vmem:[%s4 + $0x48] sm:$0xf]
      %v606 = vld [vmem:[%s4 + $0x4c] sm:$0xf]
      %v607 = vld [vmem:[%s4 + $0x50] sm:$0xf]
      %v608 = vld [vmem:[%s4 + $0x54] sm:$0xf]
      %v609 = vld [vmem:[%s4 + $0x58] sm:$0xf]
      %v610 = vld [vmem:[%s4 + $0x5c] sm:$0xf]
      %v611 = vld [vmem:[%s4 + $0x60] sm:$0xf]
      %v612 = vld [vmem:[%s4 + $0x64] sm:$0xf]
      %v613 = vld [vmem:[%s4 + $0x68] sm:$0xf]
      %v614 = vld [vmem:[%s4 + $0x6c] sm:$0xf]
      %v615 = vld [vmem:[%s4 + $0x70] sm:$0xf]
      %v616 = vld [vmem:[%s4 + $0x74] sm:$0xf]
      %v617 = vld [vmem:[%s4 + $0x78] sm:$0xf]
      %v618 = vld [vmem:[%s4 + $0x7c] sm:$0xf]
      %v619 = vld [vmem:[%s4 + $0x80] sm:$0xf]
      %v620 = vld [vmem:[%s4 + $0x84] sm:$0xf]
      %v621 = vld [vmem:[%s4 + $0x88] sm:$0xf]
      %v622 = vld [vmem:[%s4 + $0x8c] sm:$0xf]
      %v623 = vld [vmem:[%s4 + $0x90] sm:$0xf]
      %v624 = vld [vmem:[%s4 + $0x94] sm:$0xf]
      %v625 = vld [vmem:[%s4 + $0x98] sm:$0xf]
      %v626 = vld [vmem:[%s4 + $0x9c] sm:$0xf]
      %v627 = vld [vmem:[%s4 + $0xa0] sm:$0xf]
      %v628 = vld [vmem:[%s4 + $0xa4] sm:$0xf]
      %v629 = vld [vmem:[%s4 + $0xa8] sm:$0xf]
      %v630 = vld [vmem:[%s4 + $0xac] sm:$0xf]
      %v631 = vld [vmem:[%s4 + $0xb0] sm:$0xf]
      %v632 = vld [vmem:[%s4 + $0xb4] sm:$0xf]
      %v633 = vld [vmem:[%s4 + $0xb8] sm:$0xf]
      %v634 = vld [vmem:[%s4 + $0xbc] sm:$0xf]
      %v635 = vld [vmem:[%s5] sm:$0x1]
      %v637 = vlaneseq
      %v638 = vshrl.u32 %v637, 7
      %v639 = vsub.s32 0, %v638
      %v640 = vrot.slane %v635, %v639
      %v690 = vunpack.c.l.b16 %v587
      %v691 = vunpack.c.l.b16 %v588
      %v692 = vunpack.c.l.b16 %v589
      %v693 = vunpack.c.l.b16 %v590
      %v694 = vunpack.c.l.b16 %v591
      %v695 = vunpack.c.l.b16 %v592
      %v696 = vunpack.c.l.b16 %v593
      %v697 = vunpack.c.l.b16 %v594
      %v698 = vunpack.c.l.b16 %v595
      %v699 = vunpack.c.l.b16 %v596
      %v700 = vunpack.c.l.b16 %v597
      %v701 = vunpack.c.l.b16 %v598
      %v702 = vunpack.c.l.b16 %v599
      %v703 = vunpack.c.l.b16 %v600
      %v704 = vunpack.c.l.b16 %v601
      %v705 = vunpack.c.l.b16 %v602
      %v706 = vunpack.c.l.b16 %v603
      %v707 = vunpack.c.l.b16 %v604
      %v708 = vunpack.c.l.b16 %v605
      %v709 = vunpack.c.l.b16 %v606
      %v710 = vunpack.c.l.b16 %v607
      %v711 = vunpack.c.l.b16 %v608
      %v712 = vunpack.c.l.b16 %v609
      %v713 = vunpack.c.l.b16 %v610
      %v714 = vunpack.c.l.b16 %v611
      %v715 = vunpack.c.l.b16 %v612
      %v716 = vunpack.c.l.b16 %v613
      %v717 = vunpack.c.l.b16 %v614
      %v718 = vunpack.c.l.b16 %v615
      %v719 = vunpack.c.l.b16 %v616
      %v720 = vunpack.c.l.b16 %v617
      %v721 = vunpack.c.l.b16 %v618
      %v722 = vunpack.c.l.b16 %v619
      %v723 = vunpack.c.l.b16 %v620
      %v724 = vunpack.c.l.b16 %v621
      %v725 = vunpack.c.l.b16 %v622
      %v726 = vunpack.c.l.b16 %v623
      %v727 = vunpack.c.l.b16 %v624
      %v728 = vunpack.c.l.b16 %v625
      %v729 = vunpack.c.l.b16 %v626
      %v730 = vunpack.c.l.b16 %v627
      %v731 = vunpack.c.l.b16 %v628
      %v732 = vunpack.c.l.b16 %v629
      %v733 = vunpack.c.l.b16 %v630
      %v734 = vunpack.c.l.b16 %v631
      %v735 = vunpack.c.l.b16 %v632
      %v736 = vunpack.c.l.b16 %v633
      %v737 = vunpack.c.l.b16 %v634
      %v738 = vpack.c.b16 %v691, %v690
      %v739 = vpack.c.b16 %v693, %v692
      %v740 = vpack.c.b16 %v695, %v694
      %v741 = vpack.c.b16 %v697, %v696
      %v742 = vpack.c.b16 %v699, %v698
      %v743 = vpack.c.b16 %v701, %v700
      %v744 = vpack.c.b16 %v703, %v702
      %v745 = vpack.c.b16 %v705, %v704
      %v746 = vpack.c.b16 %v707, %v706
      %v747 = vpack.c.b16 %v709, %v708
      %v748 = vpack.c.b16 %v711, %v710
      %v749 = vpack.c.b16 %v713, %v712
      %v750 = vpack.c.b16 %v715, %v714
      %v751 = vpack.c.b16 %v717, %v716
      %v752 = vpack.c.b16 %v719, %v718
      %v753 = vpack.c.b16 %v721, %v720
      %v754 = vpack.c.b16 %v723, %v722
      %v755 = vpack.c.b16 %v725, %v724
      %v756 = vpack.c.b16 %v727, %v726
      %v757 = vpack.c.b16 %v729, %v728
      %v758 = vpack.c.b16 %v731, %v730
      %v759 = vpack.c.b16 %v733, %v732
      %v760 = vpack.c.b16 %v735, %v734
      %v761 = vpack.c.b16 %v737, %v736
      %786 = vmatprep.subr.bf16.mxu0 0
      %787 = vmatpush1.bf16.msra.mxu0 %v745
      %788 = vmatprep.subr.bf16.mxu0 0
      %789 = vmatpush1.bf16.msra.mxu0 %v744
      %790 = vmatprep.subr.bf16.mxu0 0
      %791 = vmatpush1.bf16.msra.mxu0 %v743
      %792 = vmatprep.subr.bf16.mxu0 0
      %793 = vmatpush1.bf16.msra.mxu0 %v742
      %794 = vmatprep.subr.bf16.mxu0 0
      %795 = vmatpush1.bf16.msra.mxu0 %v741
      %796 = vmatprep.subr.bf16.mxu0 0
      %797 = vmatpush1.bf16.msra.mxu0 %v740
      %798 = vmatprep.subr.bf16.mxu0 0
      %799 = vmatpush1.bf16.msra.mxu0 %v739
      %800 = vmatprep.subr.bf16.mxu0 0
      %801 = vmatpush1.bf16.msra.mxu0 %v738
      %802 = vmatprep.subr.bf16.mxu0 0
      %803 = vmatpush2.bf16.msra.mxu0 %v753
      %804 = vmatprep.subr.bf16.mxu0 0
      %805 = vmatpush2.bf16.msra.mxu0 %v752
      %806 = vmatprep.subr.bf16.mxu0 0
      %807 = vmatpush2.bf16.msra.mxu0 %v751
      %808 = vmatprep.subr.bf16.mxu0 0
      %809 = vmatpush2.bf16.msra.mxu0 %v750
      %810 = vmatprep.subr.bf16.mxu0 0
      %811 = vmatpush2.bf16.msra.mxu0 %v749
      %812 = vmatprep.subr.bf16.mxu0 0
      %813 = vmatpush2.bf16.msra.mxu0 %v748
      %814 = vmatprep.subr.bf16.mxu0 0
      %815 = vmatpush2.bf16.msra.mxu0 %v747
      %816 = vmatprep.subr.bf16.mxu0 0
      %817 = vmatpush2.bf16.msra.mxu0 %v746
      %818 = vmatprep.mubr.bf16.mxu0 %v585
      %819 = vmatmul.mubr.bf16.gmra.mxu0 %v584
      %v820 = vpop.f32.mrf.mxu0
      %v821 = vadd.f32 %v640, %v820
      %v822 = vpop.f32.mrf.mxu0
      %v823 = vpop.f32.mrf.mxu0
      %v824 = vadd.f32 %v640, %v823
      %v825 = vpop.f32.mrf.mxu0
      %826 = vdwg.mxu0
      %827 = vmatprep.subr.bf16.mxu0 0
      %828 = vmatpush1.bf16.msra.mxu0 %v761
      %829 = vmatprep.subr.bf16.mxu0 0
      %830 = vmatpush1.bf16.msra.mxu0 %v760
      %831 = vmatprep.subr.bf16.mxu0 0
      %832 = vmatpush1.bf16.msra.mxu0 %v759
      %833 = vmatprep.subr.bf16.mxu0 0
      %834 = vmatpush1.bf16.msra.mxu0 %v758
      %835 = vmatprep.subr.bf16.mxu0 0
      %836 = vmatpush1.bf16.msra.mxu0 %v757
      %837 = vmatprep.subr.bf16.mxu0 0
      %838 = vmatpush1.bf16.msra.mxu0 %v756
      %839 = vmatprep.subr.bf16.mxu0 0
      %840 = vmatpush1.bf16.msra.mxu0 %v755
      %841 = vmatprep.subr.bf16.mxu0 0
      %842 = vmatpush1.bf16.msra.mxu0 %v754
      %843 = vmatprep.subr.bf16.mxu0 0
      %844 = vmatpush2.bf16.msra.mxu0 0
      %845 = vmatprep.subr.bf16.mxu0 0
      %846 = vmatpush2.bf16.msra.mxu0 0
      %847 = vmatprep.subr.bf16.mxu0 0
      %848 = vmatpush2.bf16.msra.mxu0 0
      %849 = vmatprep.subr.bf16.mxu0 0
      %850 = vmatpush2.bf16.msra.mxu0 0
      %851 = vmatprep.subr.bf16.mxu0 0
      %852 = vmatpush2.bf16.msra.mxu0 0
      %853 = vmatprep.subr.bf16.mxu0 0
      %854 = vmatpush2.bf16.msra.mxu0 0
      %855 = vmatprep.subr.bf16.mxu0 0
      %856 = vmatpush2.bf16.msra.mxu0 0
      %857 = vmatprep.subr.bf16.mxu0 0
      %858 = vmatpush2.bf16.msra.mxu0 0
      %859 = vmatprep.mubr.bf16.mxu0 0
      %860 = vmatmul.mubr.bf16.gmra.mxu0 %v586
      %v861 = vpop.f32.mrf.mxu0
      %v862 = vadd.f32 %v821, %v861
      %v863 = vpop.f32.mrf.mxu0
      %v864 = vpop.f32.mrf.mxu0
      %v865 = vadd.f32 %v824, %v864
      %v866 = vpop.f32.mrf.mxu0
      %867 = vdwg.mxu0
      %v868 = vmul.f32 %v862, 0.5
      %v869 = vmul.f32 %v865, 0.5
      %v870 = vmul.f32 %v862, %v862
      %v871 = vmul.f32 %v865, %v865
      %v872 = vmul.f32 %v870, %v862
      %v873 = vmul.f32 %v871, %v865
      %v874 = vmul.f32 %v872, 0.044715
      %v875 = vmul.f32 %v873, 0.044715
      %v876 = vadd.f32 %v862, %v874
      %v877 = vadd.f32 %v865, %v875
      %v878 = vmul.f32 %v876, 0.7978846
      %v879 = vmul.f32 %v877, 0.7978846
      %v880 = vtanh.pop %v878
      %v881 = vtanh.pop %v879
      %v882 = vadd.f32 %v880, 1.0
      %v883 = vadd.f32 %v881, 1.0
      %v884 = vmul.f32 %v868, %v882
      %v885 = vmul.f32 %v869, %v883
      %v886 = vpack.c.bf16 %v885, %v884
      %v887 = vld [vmem:[%s6] sm:$0xff]
      %v888 = vld [vmem:[%s6 + $0x8] sm:$0xf]
      %v889 = vld [vmem:[%s6 + $0xc] sm:$0xff]
      %v890 = vld [vmem:[%s6 + $0x14] sm:$0xf]
      %v891 = vld [vmem:[%s6 + $0x18] sm:$0xff]
      %v892 = vld [vmem:[%s6 + $0x20] sm:$0xf]
      %v893 = vld [vmem:[%s6 + $0x24] sm:$0xff]
      %v894 = vld [vmem:[%s6 + $0x2c] sm:$0xf]
      %v903 = vunpack.c.l.b16 %v887
      %v904 = vunpack.c.h.b16 %v887
      %v905 = vunpack.c.l.b16 %v888
      %v906 = vunpack.c.l.b16 %v889
      %v907 = vunpack.c.h.b16 %v889
      %v908 = vunpack.c.l.b16 %v890
      %v909 = vunpack.c.l.b16 %v891
      %v910 = vunpack.c.h.b16 %v891
      %v911 = vunpack.c.l.b16 %v892
      %v912 = vunpack.c.l.b16 %v893
      %v913 = vunpack.c.h.b16 %v893
      %v914 = vunpack.c.l.b16 %v894
      %v915 = vpack.c.b16 %v906, %v903
      %v916 = vpack.c.b16 %v907, %v904
      %v917 = vpack.c.b16 %v908, %v905
      %v918 = vpack.c.b16 %v912, %v909
      %v919 = vpack.c.b16 %v913, %v910
      %v920 = vpack.c.b16 %v914, %v911
      %vm927 = vcmask 261120
      %v929 = vsel %vm927, %v886, 0
      %931 = vmatprep.subr.bf16.mxu0 0
      %932 = vmatpush1.bf16.msra.mxu0 0
      %933 = vmatprep.subr.bf16.mxu0 0
      %934 = vmatpush1.bf16.msra.mxu0 0
      %935 = vmatprep.subr.bf16.mxu0 0
      %936 = vmatpush1.bf16.msra.mxu0 0
      %937 = vmatprep.subr.bf16.mxu0 0
      %938 = vmatpush1.bf16.msra.mxu0 0
      %939 = vmatprep.subr.bf16.mxu0 0
      %940 = vmatpush1.bf16.msra.mxu0 0
      %941 = vmatprep.subr.bf16.mxu0 0
      %942 = vmatpush1.bf16.msra.mxu0 0
      %943 = vmatprep.subr.bf16.mxu0 %v919
      %944 = vmatpush1.bf16.msra.mxu0 %v918
      %945 = vmatprep.subr.bf16.mxu0 %v916
      %946 = vmatpush1.bf16.msra.mxu0 %v915
      %947 = vmatprep.subr.bf16.mxu0 0
      %948 = vmatpush2.bf16.msra.mxu0 0
      %949 = vmatprep.subr.bf16.mxu0 0
      %950 = vmatpush2.bf16.msra.mxu0 0
      %951 = vmatprep.subr.bf16.mxu0 0
      %952 = vmatpush2.bf16.msra.mxu0 0
      %953 = vmatprep.subr.bf16.mxu0 0
      %954 = vmatpush2.bf16.msra.mxu0 0
      %955 = vmatprep.subr.bf16.mxu0 0
      %956 = vmatpush2.bf16.msra.mxu0 0
      %957 = vmatprep.subr.bf16.mxu0 0
      %958 = vmatpush2.bf16.msra.mxu0 0
      %959 = vmatprep.subr.bf16.mxu0 0
      %960 = vmatpush2.bf16.msra.mxu0 0
      %961 = vmatprep.subr.bf16.mxu0 0
      %962 = vmatpush2.bf16.msra.mxu0 0
      %963 = vmatprep.mubr.bf16.mxu0 0
      %964 = vmatmul.mubr.bf16.gmra.mxu0 %v929
      %v965 = vpop.f32.mrf.mxu0
      %v966 = vadd.f32 0.0, %v965
      %v967 = vpop.f32.mrf.mxu0
      %v968 = vadd.f32 0.0, %v967
      %v969 = vpop.f32.mrf.mxu0
      %v970 = vadd.f32 0.0, %v969
      %v971 = vpop.f32.mrf.mxu0
      %v972 = vadd.f32 0.0, %v971
      %973 = vdwg.mxu0
      %974 = vmatprep.subr.bf16.mxu0 0
      %975 = vmatpush1.bf16.msra.mxu0 0
      %976 = vmatprep.subr.bf16.mxu0 0
      %977 = vmatpush1.bf16.msra.mxu0 0
      %978 = vmatprep.subr.bf16.mxu0 0
      %979 = vmatpush1.bf16.msra.mxu0 0
      %980 = vmatprep.subr.bf16.mxu0 0
      %981 = vmatpush1.bf16.msra.mxu0 0
      %982 = vmatprep.subr.bf16.mxu0 0
      %983 = vmatpush1.bf16.msra.mxu0 0
      %984 = vmatprep.subr.bf16.mxu0 0
      %985 = vmatpush1.bf16.msra.mxu0 0
      %986 = vmatprep.subr.bf16.mxu0 0
      %987 = vmatpush1.bf16.msra.mxu0 %v920
      %988 = vmatprep.subr.bf16.mxu0 0
      %989 = vmatpush1.bf16.msra.mxu0 %v917
      %990 = vmatprep.subr.bf16.mxu0 0
      %991 = vmatpush2.bf16.msra.mxu0 0
      %992 = vmatprep.subr.bf16.mxu0 0
      %993 = vmatpush2.bf16.msra.mxu0 0
      %994 = vmatprep.subr.bf16.mxu0 0
      %995 = vmatpush2.bf16.msra.mxu0 0
      %996 = vmatprep.subr.bf16.mxu0 0
      %997 = vmatpush2.bf16.msra.mxu0 0
      %998 = vmatprep.subr.bf16.mxu0 0
      %999 = vmatpush2.bf16.msra.mxu0 0
      %1000 = vmatprep.subr.bf16.mxu0 0
      %1001 = vmatpush2.bf16.msra.mxu0 0
      %1002 = vmatprep.subr.bf16.mxu0 0
      %1003 = vmatpush2.bf16.msra.mxu0 0
      %1004 = vmatprep.subr.bf16.mxu0 0
      %1005 = vmatpush2.bf16.msra.mxu0 0
      %1006 = vmatprep.mubr.bf16.mxu0 0
      %1007 = vmatmul.mubr.bf16.gmra.mxu0 %v929
      %v1008 = vpop.f32.mrf.mxu0
      %v1009 = vadd.f32 0.0, %v1008
      %v1010 = vpop.f32.mrf.mxu0
      %v1011 = vpop.f32.mrf.mxu0
      %v1012 = vadd.f32 0.0, %v1011
      %v1013 = vpop.f32.mrf.mxu0
      %1014 = vdwg.mxu0
      %v1015 = vpack.c.bf16 %v970, %v966
      %v1016 = vpack.c.bf16 %v972, %v968
      %v1017 = vpack.c.bf16 %v1012, %v1009
      %v1019 = vunpack.c.l.b16 %v1015
      %v1020 = vunpack.c.h.b16 %v1015
      %v1021 = vpack.c.b16 %v1019, %v1019
      %v1022 = vpack.c.b16 %v1020, %v1020
      %vm1025 = vcmask 257024
      %1026 = vst.msk [vmem:[#allocation2] sm:$0xf] %vm1025, %v1021
      %1027 = vst.msk [vmem:[#allocation2 + $0x4] sm:$0xf] %vm1025, %v1022
      %1028 = vrot.lane.b32.xlu0 %v1021, 96
      %v1029 = vpop.permute.xlu0 %1028
      %1030 = vrot.lane.b32.xlu0 %v1022, 96
      %v1031 = vpop.permute.xlu0 %1030
      %1034 = vst.msk [vmem:[#allocation2 + $0x8] sm:$0xf] %vm1025, %v1029
      %1035 = vst.msk [vmem:[#allocation2 + $0xc] sm:$0xf] %vm1025, %v1031
      %1036 = vrot.lane.b32.xlu0 %v1021, 64
      %v1037 = vpop.permute.xlu0 %1036
      %1038 = vrot.lane.b32.xlu0 %v1022, 64
      %v1039 = vpop.permute.xlu0 %1038
      %1042 = vst.msk [vmem:[#allocation2 + $0x10] sm:$0xf] %vm1025, %v1037
      %1043 = vst.msk [vmem:[#allocation2 + $0x14] sm:$0xf] %vm1025, %v1039
      %1044 = vrot.lane.b32.xlu0 %v1021, 32
      %v1045 = vpop.permute.xlu0 %1044
      %1046 = vrot.lane.b32.xlu0 %v1022, 32
      %v1047 = vpop.permute.xlu0 %1046
      %1050 = vst.msk [vmem:[#allocation2 + $0x18] sm:$0xf] %vm1025, %v1045
      %1051 = vst.msk [vmem:[#allocation2 + $0x1c] sm:$0xf] %vm1025, %v1047
      %v1053 = vunpack.c.l.b16 %v1016
      %v1054 = vunpack.c.h.b16 %v1016
      %v1055 = vpack.c.b16 %v1053, %v1053
      %v1056 = vpack.c.b16 %v1054, %v1054
      %1059 = vst.msk [vmem:[#allocation2 + $0x20] sm:$0xf] %vm1025, %v1055
      %1060 = vst.msk [vmem:[#allocation2 + $0x24] sm:$0xf] %vm1025, %v1056
      %1061 = vrot.lane.b32.xlu0 %v1055, 96
      %v1062 = vpop.permute.xlu0 %1061
      %1063 = vrot.lane.b32.xlu0 %v1056, 96
      %v1064 = vpop.permute.xlu0 %1063
      %1067 = vst.msk [vmem:[#allocation2 + $0x28] sm:$0xf] %vm1025, %v1062
      %1068 = vst.msk [vmem:[#allocation2 + $0x2c] sm:$0xf] %vm1025, %v1064
      %1069 = vrot.lane.b32.xlu0 %v1055, 64
      %v1070 = vpop.permute.xlu0 %1069
      %1071 = vrot.lane.b32.xlu0 %v1056, 64
      %v1072 = vpop.permute.xlu0 %1071
      %1075 = vst.msk [vmem:[#allocation2 + $0x30] sm:$0xf] %vm1025, %v1070
      %1076 = vst.msk [vmem:[#allocation2 + $0x34] sm:$0xf] %vm1025, %v1072
      %1077 = vrot.lane.b32.xlu0 %v1055, 32
      %v1078 = vpop.permute.xlu0 %1077
      %1079 = vrot.lane.b32.xlu0 %v1056, 32
      %v1080 = vpop.permute.xlu0 %1079
      %1083 = vst.msk [vmem:[#allocation2 + $0x38] sm:$0xf] %vm1025, %v1078
      %1084 = vst.msk [vmem:[#allocation2 + $0x3c] sm:$0xf] %vm1025, %v1080
      %v1086 = vunpack.c.l.b16 %v1017
      %v1087 = vunpack.c.h.b16 %v1017
      %v1088 = vpack.c.b16 %v1086, %v1086
      %v1089 = vpack.c.b16 %v1087, %v1087
      %1092 = vst.msk [vmem:[#allocation2 + $0x40] sm:$0xf] %vm1025, %v1088
      %1093 = vst.msk [vmem:[#allocation2 + $0x44] sm:$0xf] %vm1025, %v1089
      %v1094 = vld [vmem:[%s7] sm:$0xff]
      %v1095 = vld [vmem:[%s7 + $0x8] sm:$0xff]
      %v1096 = vld [vmem:[%s7 + $0x10] sm:$0xff]
      %v1097 = vld [vmem:[%s7 + $0x18] sm:$0xff]
      %v1098 = vld [vmem:[%s7 + $0x20] sm:$0xff]
      %v1099 = vld [vmem:[%s7 + $0x28] sm:$0xff]
      %v1100 = vld [vmem:[%s7 + $0x30] sm:$0xff]
      %v1101 = vld [vmem:[%s7 + $0x38] sm:$0xff]
      %v1102 = vld [vmem:[#allocation2] sm:$0xf]
      %v1103 = vld [vmem:[#allocation2 + $0x4] sm:$0xf]
      %v1104 = vld [vmem:[#allocation2 + $0x8] sm:$0xf]
      %v1105 = vld [vmem:[#allocation2 + $0xc] sm:$0xf]
      %v1106 = vld [vmem:[#allocation2 + $0x10] sm:$0xf]
      %v1107 = vld [vmem:[#allocation2 + $0x14] sm:$0xf]
      %v1108 = vld [vmem:[#allocation2 + $0x18] sm:$0xf]
      %v1109 = vld [vmem:[#allocation2 + $0x1c] sm:$0xf]
      %v1110 = vld [vmem:[#allocation2 + $0x20] sm:$0xf]
      %v1111 = vld [vmem:[#allocation2 + $0x24] sm:$0xf]
      %v1112 = vld [vmem:[#allocation2 + $0x28] sm:$0xf]
      %v1113 = vld [vmem:[#allocation2 + $0x2c] sm:$0xf]
      %v1114 = vld [vmem:[#allocation2 + $0x30] sm:$0xf]
      %v1115 = vld [vmem:[#allocation2 + $0x34] sm:$0xf]
      %v1116 = vld [vmem:[#allocation2 + $0x38] sm:$0xf]
      %v1117 = vld [vmem:[#allocation2 + $0x3c] sm:$0xf]
      %v1118 = vld [vmem:[#allocation2 + $0x40] sm:$0xf]
      %v1119 = vld [vmem:[#allocation2 + $0x44] sm:$0xf]
      %v1120 = vld [vmem:[%s8] sm:$0xff]
      %v1121 = vld [vmem:[%s8 + $0x8] sm:$0xff]
      %v1122 = vld [vmem:[%s8 + $0x10] sm:$0xff]
      %v1123 = vld [vmem:[%s8 + $0x18] sm:$0xff]
      %v1124 = vld [vmem:[%s8 + $0x20] sm:$0xff]
      %v1125 = vld [vmem:[%s8 + $0x28] sm:$0xff]
      %v1126 = vld [vmem:[%s8 + $0x30] sm:$0xff]
      %v1127 = vld [vmem:[%s8 + $0x38] sm:$0xff]
      %v1136 = vunpack.c.l.b16 %v1094
      %v1137 = vunpack.c.h.b16 %v1094
      %v1138 = vunpack.c.l.b16 %v1095
      %v1139 = vunpack.c.h.b16 %v1095
      %v1140 = vunpack.c.l.b16 %v1096
      %v1141 = vunpack.c.h.b16 %v1096
      %v1142 = vunpack.c.l.b16 %v1097
      %v1143 = vunpack.c.h.b16 %v1097
      %v1144 = vunpack.c.l.b16 %v1098
      %v1145 = vunpack.c.h.b16 %v1098
      %v1146 = vunpack.c.l.b16 %v1099
      %v1147 = vunpack.c.h.b16 %v1099
      %v1148 = vunpack.c.l.b16 %v1100
      %v1149 = vunpack.c.h.b16 %v1100
      %v1150 = vunpack.c.l.b16 %v1101
      %v1151 = vunpack.c.h.b16 %v1101
      %v1152 = vpack.c.b16 %v1138, %v1136
      %v1153 = vpack.c.b16 %v1139, %v1137
      %v1154 = vpack.c.b16 %v1142, %v1140
      %v1155 = vpack.c.b16 %v1143, %v1141
      %v1156 = vpack.c.b16 %v1146, %v1144
      %v1157 = vpack.c.b16 %v1147, %v1145
      %v1158 = vpack.c.b16 %v1150, %v1148
      %v1159 = vpack.c.b16 %v1151, %v1149
      %v1182 = vunpack.c.l.b16 %v1102
      %v1183 = vunpack.c.l.b16 %v1103
      %v1184 = vunpack.c.l.b16 %v1104
      %v1185 = vunpack.c.l.b16 %v1105
      %v1186 = vunpack.c.l.b16 %v1106
      %v1187 = vunpack.c.l.b16 %v1107
      %v1188 = vunpack.c.l.b16 %v1108
      %v1189 = vunpack.c.l.b16 %v1109
      %v1190 = vunpack.c.l.b16 %v1110
      %v1191 = vunpack.c.l.b16 %v1111
      %v1192 = vunpack.c.l.b16 %v1112
      %v1193 = vunpack.c.l.b16 %v1113
      %v1194 = vunpack.c.l.b16 %v1114
      %v1195 = vunpack.c.l.b16 %v1115
      %v1196 = vunpack.c.l.b16 %v1116
      %v1197 = vunpack.c.l.b16 %v1117
      %v1198 = vunpack.c.l.b16 %v1118
      %v1199 = vunpack.c.l.b16 %v1119
      %v1200 = vpack.c.b16 %v1183, %v1182
      %v1201 = vpack.c.b16 %v1185, %v1184
      %v1202 = vpack.c.b16 %v1187, %v1186
      %v1203 = vpack.c.b16 %v1189, %v1188
      %v1204 = vpack.c.b16 %v1191, %v1190
      %v1205 = vpack.c.b16 %v1193, %v1192
      %v1206 = vpack.c.b16 %v1195, %v1194
      %v1207 = vpack.c.b16 %v1197, %v1196
      %v1208 = vpack.c.b16 %v1199, %v1198
      %vm1218 = vcmask 130048
      %v1220 = vsel %vm1218, %v1153, 0
      %v1223 = vsel %vm1218, %v1155, 0
      %v1226 = vsel %vm1218, %v1157, 0
      %v1229 = vsel %vm1218, %v1159, 0
      %1231 = vmatprep.subr.bf16.mxu0 0
      %1232 = vmatpush1.bf16.msra.mxu0 %v1207
      %1233 = vmatprep.subr.bf16.mxu0 0
      %1234 = vmatpush1.bf16.msra.mxu0 %v1206
      %1235 = vmatprep.subr.bf16.mxu0 0
      %1236 = vmatpush1.bf16.msra.mxu0 %v1205
      %1237 = vmatprep.subr.bf16.mxu0 0
      %1238 = vmatpush1.bf16.msra.mxu0 %v1204
      %1239 = vmatprep.subr.bf16.mxu0 0
      %1240 = vmatpush1.bf16.msra.mxu0 %v1203
      %1241 = vmatprep.subr.bf16.mxu0 0
      %1242 = vmatpush1.bf16.msra.mxu0 %v1202
      %1243 = vmatprep.subr.bf16.mxu0 0
      %1244 = vmatpush1.bf16.msra.mxu0 %v1201
      %1245 = vmatprep.subr.bf16.mxu0 0
      %1246 = vmatpush1.bf16.msra.mxu0 %v1200
      %1247 = vmatprep.subr.bf16.mxu0 0
      %1248 = vmatpush2.bf16.msra.mxu0 0
      %1249 = vmatprep.subr.bf16.mxu0 0
      %1250 = vmatpush2.bf16.msra.mxu0 0
      %1251 = vmatprep.subr.bf16.mxu0 0
      %1252 = vmatpush2.bf16.msra.mxu0 0
      %1253 = vmatprep.subr.bf16.mxu0 0
      %1254 = vmatpush2.bf16.msra.mxu0 0
      %1255 = vmatprep.subr.bf16.mxu0 0
      %1256 = vmatpush2.bf16.msra.mxu0 0
      %1257 = vmatprep.subr.bf16.mxu0 0
      %1258 = vmatpush2.bf16.msra.mxu0 0
      %1259 = vmatprep.subr.bf16.mxu0 0
      %1260 = vmatpush2.bf16.msra.mxu0 0
      %1261 = vmatprep.subr.bf16.mxu0 0
      %1262 = vmatpush2.bf16.msra.mxu0 %v1208
      %1263 = vmatprep.mubr.bf16.mxu0 %v1220
      %1264 = vmatmul.mubr.bf16.gmra.mxu0 %v1152
      %v1265 = vpop.f32.mrf.mxu0
      %v1266 = vadd.f32 %v1120, %v1265
      %v1267 = vpop.f32.mrf.mxu0
      %v1268 = vpop.f32.mrf.mxu0
      %v1269 = vadd.f32 %v1121, %v1268
      %v1270 = vpop.f32.mrf.mxu0
      %1271 = vmatprep.mubr.bf16.mxu0 %v1223
      %1272 = vmatmul.mubr.bf16.gmra.mxu0 %v1154
      %v1273 = vpop.f32.mrf.mxu0
      %v1274 = vadd.f32 %v1122, %v1273
      %v1275 = vpop.f32.mrf.mxu0
      %v1276 = vpop.f32.mrf.mxu0
      %v1277 = vadd.f32 %v1123, %v1276
      %v1278 = vpop.f32.mrf.mxu0
      %1279 = vmatprep.mubr.bf16.mxu0 %v1226
      %1280 = vmatmul.mubr.bf16.gmra.mxu0 %v1156
      %v1281 = vpop.f32.mrf.mxu0
      %v1282 = vadd.f32 %v1124, %v1281
      %v1283 = vpop.f32.mrf.mxu0
      %v1284 = vpop.f32.mrf.mxu0
      %v1285 = vadd.f32 %v1125, %v1284
      %v1286 = vpop.f32.mrf.mxu0
      %1287 = vmatprep.mubr.bf16.mxu0 %v1229
      %1288 = vmatmul.mubr.bf16.gmra.mxu0 %v1158
      %v1289 = vpop.f32.mrf.mxu0
      %v1290 = vadd.f32 %v1126, %v1289
      %v1291 = vpop.f32.mrf.mxu0
      %v1292 = vpop.f32.mrf.mxu0
      %v1293 = vadd.f32 %v1127, %v1292
      %v1294 = vpop.f32.mrf.mxu0
      %1295 = vdwg.mxu0
      %v1296 = vpack.c.bf16 %v1269, %v1266
      %v1297 = vpack.c.bf16 %v1277, %v1274
      %v1298 = vpack.c.bf16 %v1285, %v1282
      %v1299 = vpack.c.bf16 %v1293, %v1290
      %v1300 = vld [vmem:[%s9] sm:$0xf]
      %v1301 = vld [vmem:[%s9 + $0x4] sm:$0xf]
      %v1302 = vld [vmem:[%s9 + $0x8] sm:$0xf]
      %v1303 = vld [vmem:[%s9 + $0xc] sm:$0xf]
      %v1304 = vld [vmem:[%s482] sm:$0xff]
      %v1305 = vld [vmem:[%s482 + $0x8] sm:$0xff]
      %v1306 = vld [vmem:[%s482 + $0x10] sm:$0xff]
      %v1307 = vld [vmem:[%s482 + $0x18] sm:$0xff]
      %v1308 = vld [vmem:[%s482 + $0x20] sm:$0xff]
      %v1309 = vld [vmem:[%s482 + $0x28] sm:$0xff]
      %v1310 = vld [vmem:[%s482 + $0x30] sm:$0xff]
      %v1311 = vld [vmem:[%s482 + $0x38] sm:$0xff]
      %v1312 = vpack.c.bf16 %v1305, %v1304
      %v1313 = vpack.c.bf16 %v1307, %v1306
      %v1314 = vpack.c.bf16 %v1309, %v1308
      %v1315 = vpack.c.bf16 %v1311, %v1310
      %v1316 = vld [vmem:[%s10] sm:$0xf]
      %v1317 = vld [vmem:[%s10 + $0x4] sm:$0xf]
      %v1318 = vld [vmem:[%s10 + $0x8] sm:$0xf]
      %v1319 = vld [vmem:[%s10 + $0xc] sm:$0xf]
      %v1324 = vunpack.c.l.b16 %v1316
      %v1325 = vunpack.c.l.b16 %v1317
      %v1326 = vunpack.c.l.b16 %v1318
      %v1327 = vunpack.c.l.b16 %v1319
      %v1328 = vpack.c.b16 %v1325, %v1324
      %v1329 = vpack.c.b16 %v1327, %v1326
      %v1333 = vsel %vm927, %v1312, 0
      %v1336 = vsel %vm927, %v1313, 0
      %v1339 = vsel %vm927, %v1314, 0
      %v1342 = vsel %vm927, %v1315, 0
      %1344 = vmatprep.subr.bf16.mxu0 0
      %1345 = vmatpush1.bf16.msra.mxu0 0
      %1346 = vmatprep.subr.bf16.mxu0 0
      %1347 = vmatpush1.bf16.msra.mxu0 0
      %1348 = vmatprep.subr.bf16.mxu0 0
      %1349 = vmatpush1.bf16.msra.mxu0 0
      %1350 = vmatprep.subr.bf16.mxu0 0
      %1351 = vmatpush1.bf16.msra.mxu0 0
      %1352 = vmatprep.subr.bf16.mxu0 0
      %1353 = vmatpush1.bf16.msra.mxu0 0
      %1354 = vmatprep.subr.bf16.mxu0 0
      %1355 = vmatpush1.bf16.msra.mxu0 0
      %1356 = vmatprep.subr.bf16.mxu0 0
      %1357 = vmatpush1.bf16.msra.mxu0 %v1329
      %1358 = vmatprep.subr.bf16.mxu0 0
      %1359 = vmatpush1.bf16.msra.mxu0 %v1328
      %1360 = vmatprep.subr.bf16.mxu0 0
      %1361 = vmatpush2.bf16.msra.mxu0 0
      %1362 = vmatprep.subr.bf16.mxu0 0
      %1363 = vmatpush2.bf16.msra.mxu0 0
      %1364 = vmatprep.subr.bf16.mxu0 0
      %1365 = vmatpush2.bf16.msra.mxu0 0
      %1366 = vmatprep.subr.bf16.mxu0 0
      %1367 = vmatpush2.bf16.msra.mxu0 0
      %1368 = vmatprep.subr.bf16.mxu0 0
      %1369 = vmatpush2.bf16.msra.mxu0 0
      %1370 = vmatprep.subr.bf16.mxu0 0
      %1371 = vmatpush2.bf16.msra.mxu0 0
      %1372 = vmatprep.subr.bf16.mxu0 0
      %1373 = vmatpush2.bf16.msra.mxu0 0
      %1374 = vmatprep.subr.bf16.mxu0 0
      %1375 = vmatpush2.bf16.msra.mxu0 0
      %1376 = vmatprep.mubr.bf16.mxu0 0
      %1377 = vmatmul.mubr.bf16.gmra.mxu0 %v1333
      %v1378 = vpop.f32.mrf.mxu0
      %v1379 = vadd.f32 0.0, %v1378
      %v1380 = vpop.f32.mrf.mxu0
      %v1381 = vpop.f32.mrf.mxu0
      %v1382 = vadd.f32 0.0, %v1381
      %v1383 = vpop.f32.mrf.mxu0
      %1384 = vmatprep.mubr.bf16.mxu0 0
      %1385 = vmatmul.mubr.bf16.gmra.mxu0 %v1336
      %v1386 = vpop.f32.mrf.mxu0
      %v1387 = vadd.f32 0.0, %v1386
      %v1388 = vpop.f32.mrf.mxu0
      %v1389 = vpop.f32.mrf.mxu0
      %v1390 = vadd.f32 0.0, %v1389
      %v1391 = vpop.f32.mrf.mxu0
      %1392 = vmatprep.mubr.bf16.mxu0 0
      %1393 = vmatmul.mubr.bf16.gmra.mxu0 %v1339
      %v1394 = vpop.f32.mrf.mxu0
      %v1395 = vadd.f32 0.0, %v1394
      %v1396 = vpop.f32.mrf.mxu0
      %v1397 = vpop.f32.mrf.mxu0
      %v1398 = vadd.f32 0.0, %v1397
      %v1399 = vpop.f32.mrf.mxu0
      %1400 = vmatprep.mubr.bf16.mxu0 0
      %1401 = vmatmul.mubr.bf16.gmra.mxu0 %v1342
      %v1402 = vpop.f32.mrf.mxu0
      %v1403 = vadd.f32 0.0, %v1402
      %v1404 = vpop.f32.mrf.mxu0
      %v1405 = vpop.f32.mrf.mxu0
      %v1406 = vadd.f32 0.0, %v1405
      %v1407 = vpop.f32.mrf.mxu0
      %1408 = vdwg.mxu0
      %v1413 = vunpack.c.l.b16 %v1300
      %v1414 = vunpack.c.l.b16 %v1301
      %v1415 = vunpack.c.l.b16 %v1302
      %v1416 = vunpack.c.l.b16 %v1303
      %v1417 = vpack.c.b16 %v1414, %v1413
      %v1418 = vpack.c.b16 %v1416, %v1415
      %v1422 = vsel %vm927, %v1296, 0
      %v1425 = vsel %vm927, %v1297, 0
      %v1428 = vsel %vm927, %v1298, 0
      %v1431 = vsel %vm927, %v1299, 0
      %1433 = vmatprep.subr.bf16.mxu0 0
      %1434 = vmatpush1.bf16.msra.mxu0 0
      %1435 = vmatprep.subr.bf16.mxu0 0
      %1436 = vmatpush1.bf16.msra.mxu0 0
      %1437 = vmatprep.subr.bf16.mxu0 0
      %1438 = vmatpush1.bf16.msra.mxu0 0
      %1439 = vmatprep.subr.bf16.mxu0 0
      %1440 = vmatpush1.bf16.msra.mxu0 0
      %1441 = vmatprep.subr.bf16.mxu0 0
      %1442 = vmatpush1.bf16.msra.mxu0 0
      %1443 = vmatprep.subr.bf16.mxu0 0
      %1444 = vmatpush1.bf16.msra.mxu0 0
      %1445 = vmatprep.subr.bf16.mxu0 0
      %1446 = vmatpush1.bf16.msra.mxu0 %v1418
      %1447 = vmatprep.subr.bf16.mxu0 0
      %1448 = vmatpush1.bf16.msra.mxu0 %v1417
      %1449 = vmatprep.subr.bf16.mxu0 0
      %1450 = vmatpush2.bf16.msra.mxu0 0
      %1451 = vmatprep.subr.bf16.mxu0 0
      %1452 = vmatpush2.bf16.msra.mxu0 0
      %1453 = vmatprep.subr.bf16.mxu0 0
      %1454 = vmatpush2.bf16.msra.mxu0 0
      %1455 = vmatprep.subr.bf16.mxu0 0
      %1456 = vmatpush2.bf16.msra.mxu0 0
      %1457 = vmatprep.subr.bf16.mxu0 0
      %1458 = vmatpush2.bf16.msra.mxu0 0
      %1459 = vmatprep.subr.bf16.mxu0 0
      %1460 = vmatpush2.bf16.msra.mxu0 0
      %1461 = vmatprep.subr.bf16.mxu0 0
      %1462 = vmatpush2.bf16.msra.mxu0 0
      %1463 = vmatprep.subr.bf16.mxu0 0
      %1464 = vmatpush2.bf16.msra.mxu0 0
      %1465 = vmatprep.mubr.bf16.mxu0 0
      %1466 = vmatmul.mubr.bf16.gmra.mxu0 %v1422
      %v1467 = vpop.f32.mrf.mxu0
      %v1468 = vadd.f32 %v1379, %v1467
      %v1469 = vpop.f32.mrf.mxu0
      %v1470 = vpop.f32.mrf.mxu0
      %v1471 = vadd.f32 %v1382, %v1470
      %v1472 = vpop.f32.mrf.mxu0
      %1473 = vmatprep.mubr.bf16.mxu0 0
      %1474 = vmatmul.mubr.bf16.gmra.mxu0 %v1425
      %v1475 = vpop.f32.mrf.mxu0
      %v1476 = vadd.f32 %v1387, %v1475
      %v1477 = vpop.f32.mrf.mxu0
      %v1478 = vpop.f32.mrf.mxu0
      %v1479 = vadd.f32 %v1390, %v1478
      %v1480 = vpop.f32.mrf.mxu0
      %1481 = vmatprep.mubr.bf16.mxu0 0
      %1482 = vmatmul.mubr.bf16.gmra.mxu0 %v1428
      %v1483 = vpop.f32.mrf.mxu0
      %v1484 = vadd.f32 %v1395, %v1483
      %v1485 = vpop.f32.mrf.mxu0
      %v1486 = vpop.f32.mrf.mxu0
      %v1487 = vadd.f32 %v1398, %v1486
      %v1488 = vpop.f32.mrf.mxu0
      %1489 = vmatprep.mubr.bf16.mxu0 0
      %1490 = vmatmul.mubr.bf16.gmra.mxu0 %v1431
      %v1491 = vpop.f32.mrf.mxu0
      %v1492 = vadd.f32 %v1403, %v1491
      %v1493 = vpop.f32.mrf.mxu0
      %v1494 = vpop.f32.mrf.mxu0
      %v1495 = vadd.f32 %v1406, %v1494
      %v1496 = vpop.f32.mrf.mxu0
      %1497 = vdwg.mxu0
      %v1498 = vld [vmem:[%s11] sm:$0x1]
      %v1500 = vlaneseq
      %v1501 = vshrl.u32 %v1500, 7
      %v1502 = vsub.s32 0, %v1501
      %v1503 = vrot.slane %v1498, %v1502
      %v1505 = vadd.f32 %v1468, %v1503
      %v1506 = vadd.f32 %v1471, %v1503
      %v1507 = vadd.f32 %v1476, %v1503
      %v1508 = vadd.f32 %v1479, %v1503
      %v1509 = vadd.f32 %v1484, %v1503
      %v1510 = vadd.f32 %v1487, %v1503
      %v1511 = vadd.f32 %v1492, %v1503
      %v1512 = vadd.f32 %v1495, %v1503
      %v1513 = vmul.f32 %v1505, 0.5
      %v1514 = vmul.f32 %v1506, 0.5
      %v1515 = vmul.f32 %v1507, 0.5
      %v1516 = vmul.f32 %v1508, 0.5
      %v1517 = vmul.f32 %v1509, 0.5
      %v1518 = vmul.f32 %v1510, 0.5
      %v1519 = vmul.f32 %v1511, 0.5
      %v1520 = vmul.f32 %v1512, 0.5
      %v1521 = vmul.f32 %v1505, %v1505
      %v1522 = vmul.f32 %v1506, %v1506
      %v1523 = vmul.f32 %v1507, %v1507
      %v1524 = vmul.f32 %v1508, %v1508
      %v1525 = vmul.f32 %v1509, %v1509
      %v1526 = vmul.f32 %v1510, %v1510
      %v1527 = vmul.f32 %v1511, %v1511
      %v1528 = vmul.f32 %v1512, %v1512
      %v1529 = vmul.f32 %v1521, %v1505
      %v1530 = vmul.f32 %v1522, %v1506
      %v1531 = vmul.f32 %v1523, %v1507
      %v1532 = vmul.f32 %v1524, %v1508
      %v1533 = vmul.f32 %v1525, %v1509
      %v1534 = vmul.f32 %v1526, %v1510
      %v1535 = vmul.f32 %v1527, %v1511
      %v1536 = vmul.f32 %v1528, %v1512
      %v1537 = vmul.f32 %v1529, 0.044715
      %v1538 = vmul.f32 %v1530, 0.044715
      %v1539 = vmul.f32 %v1531, 0.044715
      %v1540 = vmul.f32 %v1532, 0.044715
      %v1541 = vmul.f32 %v1533, 0.044715
      %v1542 = vmul.f32 %v1534, 0.044715
      %v1543 = vmul.f32 %v1535, 0.044715
      %v1544 = vmul.f32 %v1536, 0.044715
      %v1545 = vadd.f32 %v1505, %v1537
      %v1546 = vadd.f32 %v1506, %v1538
      %v1547 = vadd.f32 %v1507, %v1539
      %v1548 = vadd.f32 %v1508, %v1540
      %v1549 = vadd.f32 %v1509, %v1541
      %v1550 = vadd.f32 %v1510, %v1542
      %v1551 = vadd.f32 %v1511, %v1543
      %v1552 = vadd.f32 %v1512, %v1544
      %v1553 = vmul.f32 %v1545, 0.7978846
      %v1554 = vmul.f32 %v1546, 0.7978846
      %v1555 = vmul.f32 %v1547, 0.7978846
      %v1556 = vmul.f32 %v1548, 0.7978846
      %v1557 = vmul.f32 %v1549, 0.7978846
      %v1558 = vmul.f32 %v1550, 0.7978846
      %v1559 = vmul.f32 %v1551, 0.7978846
      %v1560 = vmul.f32 %v1552, 0.7978846
      %v1561 = vtanh.pop %v1553
      %v1562 = vtanh.pop %v1554
      %v1563 = vtanh.pop %v1555
      %v1564 = vtanh.pop %v1556
      %v1565 = vtanh.pop %v1557
      %v1566 = vtanh.pop %v1558
      %v1567 = vtanh.pop %v1559
      %v1568 = vtanh.pop %v1560
      %v1569 = vadd.f32 %v1561, 1.0
      %v1570 = vadd.f32 %v1562, 1.0
      %v1571 = vadd.f32 %v1563, 1.0
      %v1572 = vadd.f32 %v1564, 1.0
      %v1573 = vadd.f32 %v1565, 1.0
      %v1574 = vadd.f32 %v1566, 1.0
      %v1575 = vadd.f32 %v1567, 1.0
      %v1576 = vadd.f32 %v1568, 1.0
      %v1577 = vmul.f32 %v1513, %v1569
      %v1578 = vmul.f32 %v1514, %v1570
      %v1579 = vmul.f32 %v1515, %v1571
      %v1580 = vmul.f32 %v1516, %v1572
      %v1581 = vmul.f32 %v1517, %v1573
      %v1582 = vmul.f32 %v1518, %v1574
      %v1583 = vmul.f32 %v1519, %v1575
      %v1584 = vmul.f32 %v1520, %v1576
      %v1585 = vpack.c.bf16 %v1578, %v1577
      %v1586 = vpack.c.bf16 %v1580, %v1579
      %v1587 = vpack.c.bf16 %v1582, %v1581
      %v1588 = vpack.c.bf16 %v1584, %v1583
      %v1589 = vld [vmem:[%s12] sm:$0xf]
      %v1590 = vld [vmem:[%s12 + $0x4] sm:$0xf]
      %v1591 = vld [vmem:[%s12 + $0x8] sm:$0xf]
      %v1592 = vld [vmem:[%s12 + $0xc] sm:$0xf]
      %v1593 = vld [vmem:[%s13] sm:$0x1]
      %v1595 = vlaneseq
      %v1596 = vshrl.u32 %v1595, 7
      %v1597 = vsub.s32 0, %v1596
      %v1598 = vrot.slane %v1593, %v1597
      %v1604 = vunpack.c.l.b16 %v1589
      %v1605 = vunpack.c.l.b16 %v1590
      %v1606 = vunpack.c.l.b16 %v1591
      %v1607 = vunpack.c.l.b16 %v1592
      %v1608 = vpack.c.b16 %v1605, %v1604
      %v1609 = vpack.c.b16 %v1607, %v1606
      %v1613 = vsel %vm927, %v1585, 0
      %v1616 = vsel %vm927, %v1586, 0
      %v1619 = vsel %vm927, %v1587, 0
      %v1622 = vsel %vm927, %v1588, 0
      %1624 = vmatprep.subr.bf16.mxu0 0
      %1625 = vmatpush1.bf16.msra.mxu0 0
      %1626 = vmatprep.subr.bf16.mxu0 0
      %1627 = vmatpush1.bf16.msra.mxu0 0
      %1628 = vmatprep.subr.bf16.mxu0 0
      %1629 = vmatpush1.bf16.msra.mxu0 0
      %1630 = vmatprep.subr.bf16.mxu0 0
      %1631 = vmatpush1.bf16.msra.mxu0 0
      %1632 = vmatprep.subr.bf16.mxu0 0
      %1633 = vmatpush1.bf16.msra.mxu0 0
      %1634 = vmatprep.subr.bf16.mxu0 0
      %1635 = vmatpush1.bf16.msra.mxu0 0
      %1636 = vmatprep.subr.bf16.mxu0 0
      %1637 = vmatpush1.bf16.msra.mxu0 %v1609
      %1638 = vmatprep.subr.bf16.mxu0 0
      %1639 = vmatpush1.bf16.msra.mxu0 %v1608
      %1640 = vmatprep.subr.bf16.mxu0 0
      %1641 = vmatpush2.bf16.msra.mxu0 0
      %1642 = vmatprep.subr.bf16.mxu0 0
      %1643 = vmatpush2.bf16.msra.mxu0 0
      %1644 = vmatprep.subr.bf16.mxu0 0
      %1645 = vmatpush2.bf16.msra.mxu0 0
      %1646 = vmatprep.subr.bf16.mxu0 0
      %1647 = vmatpush2.bf16.msra.mxu0 0
      %1648 = vmatprep.subr.bf16.mxu0 0
      %1649 = vmatpush2.bf16.msra.mxu0 0
      %1650 = vmatprep.subr.bf16.mxu0 0
      %1651 = vmatpush2.bf16.msra.mxu0 0
      %1652 = vmatprep.subr.bf16.mxu0 0
      %1653 = vmatpush2.bf16.msra.mxu0 0
      %1654 = vmatprep.subr.bf16.mxu0 0
      %1655 = vmatpush2.bf16.msra.mxu0 0
      %1656 = vmatprep.mubr.bf16.mxu0 0
      %1657 = vmatmul.mubr.bf16.gmra.mxu0 %v1613
      %v1658 = vpop.f32.mrf.mxu0
      %v1659 = vadd.f32 %v1598, %v1658
      %v1660 = vpop.f32.mrf.mxu0
      %v1661 = vpop.f32.mrf.mxu0
      %v1662 = vadd.f32 %v1598, %v1661
      %v1663 = vpop.f32.mrf.mxu0
      %1664 = vmatprep.mubr.bf16.mxu0 0
      %1665 = vmatmul.mubr.bf16.gmra.mxu0 %v1616
      %v1666 = vpop.f32.mrf.mxu0
      %v1667 = vadd.f32 %v1598, %v1666
      %v1668 = vpop.f32.mrf.mxu0
      %v1669 = vpop.f32.mrf.mxu0
      %v1670 = vadd.f32 %v1598, %v1669
      %v1671 = vpop.f32.mrf.mxu0
      %1672 = vmatprep.mubr.bf16.mxu0 0
      %1673 = vmatmul.mubr.bf16.gmra.mxu0 %v1619
      %v1674 = vpop.f32.mrf.mxu0
      %v1675 = vadd.f32 %v1598, %v1674
      %v1676 = vpop.f32.mrf.mxu0
      %v1677 = vpop.f32.mrf.mxu0
      %v1678 = vadd.f32 %v1598, %v1677
      %v1679 = vpop.f32.mrf.mxu0
      %1680 = vmatprep.mubr.bf16.mxu0 0
      %1681 = vmatmul.mubr.bf16.gmra.mxu0 %v1622
      %v1682 = vpop.f32.mrf.mxu0
      %v1683 = vadd.f32 %v1598, %v1682
      %v1684 = vpop.f32.mrf.mxu0
      %v1685 = vpop.f32.mrf.mxu0
      %v1686 = vadd.f32 %v1598, %v1685
      %v1687 = vpop.f32.mrf.mxu0
      %1688 = vdwg.mxu0
      %1689 = vst.msk [vmem:[%s487] sm:$0xff] %vm927, %v1659
      %1690 = vst.msk [vmem:[%s487 + $0x8] sm:$0xff] %vm927, %v1662
      %1691 = vst.msk [vmem:[%s487 + $0x10] sm:$0xff] %vm927, %v1667
      %1692 = vst.msk [vmem:[%s487 + $0x18] sm:$0xff] %vm927, %v1670
      %1693 = vst.msk [vmem:[%s487 + $0x20] sm:$0xff] %vm927, %v1675
      %1694 = vst.msk [vmem:[%s487 + $0x28] sm:$0xff] %vm927, %v1678
      %1695 = vst.msk [vmem:[%s487 + $0x30] sm:$0xff] %vm927, %v1683
      %1696 = vst.msk [vmem:[%s487 + $0x38] sm:$0xff] %vm927, %v1686
      %p1697 = scmp.lt.s32.totalorder %s25, 1
      %s1698 = scalar_select %p1697, %s25, 1
      %s1699 = smul.addr %s1698, 8
      %s1700 = smul.addr %s1699, 8
      %s1701 = scalar_lea.vmem %s14, %s1700
      // Predicated region
      $region77: #{tpu_custom_call.1} parent=75 // pred_check
        %p1702 = pneg %p347
      $region78: #{tpu_custom_call.1} parent=75 // pred_check_branch
        %1704 = sbr.rel (%p1702) target = $region80
      $region79: #{tpu_custom_call.1} parent=75 // pred_region
        _
      $region80: #{tpu_custom_call.1} parent=75 // pred_fallthru
        _
    $region76: #{tpu_custom_call.1} parent=5 // pred_fallthru
      _
    %p1705 = scmp.le.s32.totalorder 2, %s20
    // Predicated region
    $region81: #{tpu_custom_call.1} parent=5 // pred_check
      %p1706 = pneg %p1705
    $region82: #{tpu_custom_call.1} parent=5 // pred_check_branch
      %1708 = sbr.rel (%p1706) target = $region84
    $region83: #{tpu_custom_call.1} parent=5 // pred_region
      %s1709 = ssub.s32 %s20, 2
      // Predicated region
      $region85: #{tpu_custom_call.1} parent=83 // pred_check
        %p1710 = pneg %p353
      $region86: #{tpu_custom_call.1} parent=83 // pred_check_branch
        %1712 = sbr.rel (%p1710) target = $region88
      $region87: #{tpu_custom_call.1} parent=83 // pred_region
        %p1713 = scmp.lt.s32.totalorder %s26, 1
        %s1714 = scalar_select %p1713, %s26, 1
        %s1715 = smul.addr %s1714, 8
        %s1716 = smul.addr %s1715, 8
        %s1717 = scalar_lea.vmem %s14, %s1716
      $region88: #{tpu_custom_call.1} parent=83 // pred_fallthru
        _
    $region84: #{tpu_custom_call.1} parent=5 // pred_fallthru
      _
  $region6: #{tpu_custom_call.1} parent=0 // loop_footer
    %s24 = sadd.s32 1, %s20
  $region7: #{tpu_custom_call.1} parent=0 // loop_footer_branch
    %19 = sbr.rel target = $region3
  $region8: #{tpu_custom_call.1} parent=0 // loop_exit
    _

</llo_original>
